<compile_context>
chip_gen: v6e
topology: v6e:2x2x1
jax: 0.10.0
libtpu: 0.0.40
codegen_flags: <defaults>
</compile_context>

<pallas_src>
import math

import numpy as np
import jax
import jax.numpy as jnp
from jax.experimental import pallas as pl
from jax.experimental.pallas import tpu as pltpu

# -------- model config (matches the reference forward) --------
B, T, D, H = 2, 8, 32, 4          # batch, seq (<= n_ctx), n_embd, n_head
HD = D // H                       # head dim
EPS = 1e-5                        # layer_norm_epsilon
MASKED_BIAS = -10000.0            # Attention.masked_bias

# -------- kernel batching knob --------
# Sequences packed into one activation slab per grid step.  Grow this (and the
# input batch) to push the matmul M-dim toward 128 (v5e) / 256 (v6e, v7x);
# the block-diagonal attention bias below generalizes automatically.
SEQS_PER_GROUP = 2
GT = SEQS_PER_GROUP * T           # rows per group slab (16 here)

LANES = 128                       # lane width of the packed parameter block

# ---- packed parameter block row layout (all offsets static, 8-aligned where
#      they feed the MXU) ----
_POS = 0                                   # GT rows, lanes [0, D): tiled pos embeds
_SP0 = ((GT + 7) // 8) * 8                 # 16
_LN1G, _LN1B = _SP0 + 0, _SP0 + 1
_LN2G, _LN2B = _SP0 + 2, _SP0 + 3
_LNFG, _LNFB = _SP0 + 4, _SP0 + 5
_BQKV = _SP0 + 6                           # lanes [0, 3D)  (Q part pre-scaled)
_BPROJ = _SP0 + 7                          # lanes [0, D)
_BFC = _SP0 + 8                            # lanes [0, 4D)
_BFC2 = _SP0 + 9                           # lanes [0, D)
_W0 = _SP0 + 16                            # 32
_WQKV = _W0                                # D rows,  lanes [0, 3D)  (Q cols pre-scaled)
_WPROJ = _W0 + D                           # D rows,  lanes [0, D)
_WFC = _W0 + 2 * D                         # D rows,  lanes [0, 4D)
_WFC2 = _W0 + 3 * D                        # 4D rows, lanes [0, D)
_ABIAS = _W0 + 7 * D                       # GT rows, lanes [0, GT): additive attn bias
PK_ROWS = _ABIAS + ((GT + 7) // 8) * 8     # 272


def _layernorm(v, g, b):
    mu = jnp.mean(v, axis=-1, keepdims=True)
    var = jnp.mean(jnp.square(v - mu), axis=-1, keepdims=True)
    return (v - mu) * jax.lax.rsqrt(var + EPS) * g + b


def _gelu_new(x):
    # GPT2 "gelu_new" (tanh approximation)
    return 0.5 * x * (1.0 + jnp.tanh(
        math.sqrt(2.0 / math.pi) * (x + 0.044715 * x * x * x)))


def plan_kernel(x_ref, pk_ref, out_ref):
    x = x_ref[...]                                      # (GT, D) sentence_hidden slab
    h = x + pk_ref[_POS:_POS + GT, 0:D]                 # + position embeds (drop = id)

    # ---------------- Block: self-attention ----------------
    h1 = _layernorm(h, pk_ref[_LN1G:_LN1G + 1, 0:D], pk_ref[_LN1B:_LN1B + 1, 0:D])
    qkv = jnp.dot(h1, pk_ref[_WQKV:_WQKV + D, 0:3 * D],
                  preferred_element_type=jnp.float32) + pk_ref[_BQKV:_BQKV + 1, 0:3 * D]

    # host-built additive mask: 0 where attendable (same sequence & causal),
    # -1e4 elsewhere -> exp underflows to exactly 0 (matches reference masking)
    attn_bias = pk_ref[_ABIAS:_ABIAS + GT, 0:GT]        # (GT, GT)

    acc = jnp.zeros((GT, D), jnp.float32)
    for hh in range(H):                                 # static unroll over heads
        lo = hh * HD
        qh = qkv[:, lo:lo + HD]                         # already scaled by 1/sqrt(HD)
        kh = qkv[:, D + lo:D + lo + HD]
        vh = qkv[:, 2 * D + lo:2 * D + lo + HD]
        s = jax.lax.dot_general(qh, kh, (((1,), (1,)), ((), ())),
                                preferred_element_type=jnp.float32) + attn_bias
        # no max-subtraction: |allowed s| << 88 post-LayerNorm, masked s ~ -1e4
        p = jnp.exp(s)
        p = p / jnp.sum(p, axis=-1, keepdims=True)      # exact softmax denom
        pv = jnp.dot(p, vh, preferred_element_type=jnp.float32)       # (GT, HD)
        # merge_heads + c_proj fused: concat(heads) @ Wproj == sum_h pv_h @ Wproj[h]
        acc = acc + jnp.dot(pv, pk_ref[_WPROJ + lo:_WPROJ + lo + HD, 0:D],
                            preferred_element_type=jnp.float32)
    h = h + acc + pk_ref[_BPROJ:_BPROJ + 1, 0:D]        # c_proj bias + residual

    # ---------------- Block: MLP ----------------
    h2 = _layernorm(h, pk_ref[_LN2G:_LN2G + 1, 0:D], pk_ref[_LN2B:_LN2B + 1, 0:D])
    f = jnp.dot(h2, pk_ref[_WFC:_WFC + D, 0:4 * D],
                preferred_element_type=jnp.float32) + pk_ref[_BFC:_BFC + 1, 0:4 * D]
    f = _gelu_new(f)
    m = jnp.dot(f, pk_ref[_WFC2:_WFC2 + 4 * D, 0:D],
                preferred_element_type=jnp.float32) + pk_ref[_BFC2:_BFC2 + 1, 0:D]
    h = h + m                                           # residual

    # ---------------- final LayerNorm ----------------
    out_ref[...] = _layernorm(h, pk_ref[_LNFG:_LNFG + 1, 0:D],
                              pk_ref[_LNFB:_LNFB + 1, 0:D])


def _build_attn_bias():
    """Additive attention bias for one group slab: 0 where row may attend to
    column (same sequence, causal), MASKED_BIAS elsewhere. Built with numpy."""
    ri = np.arange(GT)[:, None]
    ci = np.arange(GT)[None, :]
    allowed = ((ri // T) == (ci // T)) & (ri >= ci)
    return np.where(allowed, 0.0, MASKED_BIAS).astype(np.float32)


def pack_params(pos, ln1g, ln1b, wqkv, bqkv, wproj, bproj,
                ln2g, ln2b, wfc, bfc, wfc2, bfc2, lnfg, lnfb):
    """Pack all parameters (and the attention bias matrix) into one lane-dense
    (PK_ROWS, 128) f32 block. The 1/sqrt(HD) attention scale is folded into the
    Q columns of c_attn here (zero runtime cost)."""
    qscale = 1.0 / math.sqrt(HD)
    wqkv_s = jnp.concatenate([wqkv[:, :D] * qscale, wqkv[:, D:]], axis=-1)
    bqkv_s = jnp.concatenate([bqkv[:D] * qscale, bqkv[D:]], axis=0)

    pk = jnp.zeros((PK_ROWS, LANES), jnp.float32)
    pk = pk.at[_POS:_POS + GT, 0:D].set(jnp.tile(pos, (SEQS_PER_GROUP, 1)))
    pk = pk.at[_LN1G, 0:D].set(ln1g)
    pk = pk.at[_LN1B, 0:D].set(ln1b)
    pk = pk.at[_LN2G, 0:D].set(ln2g)
    pk = pk.at[_LN2B, 0:D].set(ln2b)
    pk = pk.at[_LNFG, 0:D].set(lnfg)
    pk = pk.at[_LNFB, 0:D].set(lnfb)
    pk = pk.at[_BQKV, 0:3 * D].set(bqkv_s)
    pk = pk.at[_BPROJ, 0:D].set(bproj)
    pk = pk.at[_BFC, 0:4 * D].set(bfc)
    pk = pk.at[_BFC2, 0:D].set(bfc2)
    pk = pk.at[_WQKV:_WQKV + D, 0:3 * D].set(wqkv_s)     # attn.c_attn (D, 3D)
    pk = pk.at[_WPROJ:_WPROJ + D, 0:D].set(wproj)        # attn.c_proj (D, D)
    pk = pk.at[_WFC:_WFC + D, 0:4 * D].set(wfc)          # mlp.c_fc   (D, 4D)
    pk = pk.at[_WFC2:_WFC2 + 4 * D, 0:D].set(wfc2)       # mlp.c_proj (4D, D)
    pk = pk.at[_ABIAS:_ABIAS + GT, 0:GT].set(jnp.asarray(_build_attn_bias()))
    return pk


@jax.jit
def plan_model_forward(sentence_hidden, pk):
    Bx, Tx, Dx = sentence_hidden.shape
    assert Tx == T and Dx == D and Bx % SEQS_PER_GROUP == 0
    n_groups = Bx // SEQS_PER_GROUP

    x2d = sentence_hidden.reshape(n_groups * GT, D)      # free (contiguous) reshape
    out2d = pl.pallas_call(
        plan_kernel,
        out_shape=jax.ShapeDtypeStruct((n_groups * GT, D), jnp.float32),
        grid=(n_groups,),
        in_specs=[
            pl.BlockSpec((GT, D), lambda g: (g, 0)),          # activation slab per group
            pl.BlockSpec((PK_ROWS, LANES), lambda g: (0, 0)),  # params: VMEM-resident
        ],
        out_specs=pl.BlockSpec((GT, D), lambda g: (g, 0)),
        compiler_params=pltpu.CompilerParams(
            dimension_semantics=("parallel",)),               # shards groups on v7x TCs
    )(x2d, pk)
    hidden_states = out2d.reshape(Bx, Tx, Dx)

    # Reference loss: MSE(hidden[0, :-1, :], sentence_hidden[0, 1:, :]) -- batch 0
    # only, shifted by one step (exactly as PlanModel.forward). Kept in the wrapper.
    loss = jnp.mean(jnp.square(hidden_states[0, :-1, :] - sentence_hidden[0, 1:, :]))
    return hidden_states, loss


if __name__ == "__main__":
    key = jax.random.PRNGKey(0)
    ks = jax.random.split(key, 8)

    # input: sentence_hidden (B, T, n_embd)
    x = jax.random.normal(ks[0], (B, T, D), dtype=jnp.float32)

    # deterministic "GPT2-style" parameter init (normal * 0.02, zero biases)
    wpe = 0.02 * jax.random.normal(ks[1], (256, D), dtype=jnp.float32)
    pos = wpe[:T]                                        # wpe(arange(T))
    ln1g, ln1b = jnp.ones((D,), jnp.float32), jnp.zeros((D,), jnp.float32)
    wqkv = 0.02 * jax.random.normal(ks[2], (D, 3 * D), dtype=jnp.float32)
    bqkv = jnp.zeros((3 * D,), jnp.float32)
    wproj = 0.02 * jax.random.normal(ks[3], (D, D), dtype=jnp.float32)
    bproj = jnp.zeros((D,), jnp.float32)
    ln2g, ln2b = jnp.ones((D,), jnp.float32), jnp.zeros((D,), jnp.float32)
    wfc = 0.02 * jax.random.normal(ks[4], (D, 4 * D), dtype=jnp.float32)
    bfc = jnp.zeros((4 * D,), jnp.float32)
    wfc2 = 0.02 * jax.random.normal(ks[5], (4 * D, D), dtype=jnp.float32)
    bfc2 = jnp.zeros((D,), jnp.float32)
    lnfg, lnfb = jnp.ones((D,), jnp.float32), jnp.zeros((D,), jnp.float32)

    packed = pack_params(pos, ln1g, ln1b, wqkv, bqkv, wproj, bproj,
                         ln2g, ln2b, wfc, bfc, wfc2, bfc2, lnfg, lnfb)

    hidden_states, loss = plan_model_forward(x, packed)
    jax.block_until_ready((hidden_states, loss))
    print("KERNEL_OK")
</pallas_src>

<mosaic_0001>
module attributes {stable_mosaic.version = 11 : i64} {
  func.func @plan_kernel(%arg0: i32, %arg1: memref<16x32xf32, #tpu.memory_space<vmem>>, %arg2: memref<272x128xf32, #tpu.memory_space<vmem>>, %arg3: memref<16x32xf32, #tpu.memory_space<vmem>>) attributes {dimension_semantics = [#tpu.dimension_semantics<parallel>], iteration_bounds = array<i64: 1>, scalar_prefetch = 0 : i64, scratch_operands = 0 : i64, tpu.core_type = #tpu.core_type<tc>, window_params = [{transform_indices = @transform_0, window_bounds = array<i64: 16, 32>}, {pipeline_mode = #tpu.pipeline_mode<synchronous>, transform_indices = @transform_1, window_bounds = array<i64: 272, 128>}, {transform_indices = @transform_2, window_bounds = array<i64: 16, 32>}]} {
    %c0 = arith.constant 0 : index
    %c0_0 = arith.constant 0 : index
    %0 = vector.load %arg1[%c0, %c0_0] : memref<16x32xf32, #tpu.memory_space<vmem>>, vector<16x32xf32>
    %c0_1 = arith.constant 0 : index
    %c0_2 = arith.constant 0 : index
    %1 = vector.load %arg2[%c0_1, %c0_2] : memref<272x128xf32, #tpu.memory_space<vmem>>, vector<16x32xf32>
    %2 = arith.addf %0, %1 : vector<16x32xf32>
    %c16 = arith.constant 16 : index
    %c0_3 = arith.constant 0 : index
    %3 = vector.load %arg2[%c16, %c0_3] : memref<272x128xf32, #tpu.memory_space<vmem>>, vector<1x32xf32>
    %c17 = arith.constant 17 : index
    %c0_4 = arith.constant 0 : index
    %4 = vector.load %arg2[%c17, %c0_4] : memref<272x128xf32, #tpu.memory_space<vmem>>, vector<1x32xf32>
    %cst = arith.constant dense<0.000000e+00> : vector<16xf32>
    %5 = vector.multi_reduction <add>, %2, %cst [1] : vector<16x32xf32> to vector<16xf32>
    %6 = vector.shape_cast %5 : vector<16xf32> to vector<16x1xf32>
    %cst_5 = arith.constant 3.200000e+01 : f32
    %7 = vector.broadcast %cst_5 : f32 to vector<16x1xf32>
    %8 = arith.divf %6, %7 : vector<16x1xf32>
    %9 = vector.broadcast %8 : vector<16x1xf32> to vector<16x32xf32>
    %10 = arith.subf %2, %9 : vector<16x32xf32>
    %11 = arith.mulf %10, %10 : vector<16x32xf32>
    %cst_6 = arith.constant dense<0.000000e+00> : vector<16xf32>
    %12 = vector.multi_reduction <add>, %11, %cst_6 [1] : vector<16x32xf32> to vector<16xf32>
    %13 = vector.shape_cast %12 : vector<16xf32> to vector<16x1xf32>
    %cst_7 = arith.constant 3.200000e+01 : f32
    %14 = vector.broadcast %cst_7 : f32 to vector<16x1xf32>
    %15 = arith.divf %13, %14 : vector<16x1xf32>
    %16 = vector.broadcast %8 : vector<16x1xf32> to vector<16x32xf32>
    %17 = arith.subf %2, %16 : vector<16x32xf32>
    %cst_8 = arith.constant 9.99999974E-6 : f32
    %18 = vector.broadcast %cst_8 : f32 to vector<16x1xf32>
    %19 = arith.addf %15, %18 : vector<16x1xf32>
    %20 = math.rsqrt %19 : vector<16x1xf32>
    %21 = vector.broadcast %20 : vector<16x1xf32> to vector<16x32xf32>
    %22 = arith.mulf %17, %21 : vector<16x32xf32>
    %23 = vector.broadcast %3 : vector<1x32xf32> to vector<16x32xf32>
    %24 = arith.mulf %22, %23 : vector<16x32xf32>
    %25 = vector.broadcast %4 : vector<1x32xf32> to vector<16x32xf32>
    %26 = arith.addf %24, %25 : vector<16x32xf32>
    %c32 = arith.constant 32 : index
    %c0_9 = arith.constant 0 : index
    %27 = vector.load %arg2[%c32, %c0_9] : memref<272x128xf32, #tpu.memory_space<vmem>>, vector<32x96xf32>
    %cst_10 = arith.constant dense<0.000000e+00> : vector<16x96xf32>
    %28 = tpu.matmul %26, %27, %cst_10 {dimension_numbers = #tpu.dot_dimension_numbers<[1], [0], [0], [1], [0, 0, 1, 1], [], []>} : vector<16x32xf32>, vector<32x96xf32>, vector<16x96xf32> -> vector<16x96xf32>
    %c22 = arith.constant 22 : index
    %c0_11 = arith.constant 0 : index
    %29 = vector.load %arg2[%c22, %c0_11] : memref<272x128xf32, #tpu.memory_space<vmem>>, vector<1x96xf32>
    %30 = vector.broadcast %29 : vector<1x96xf32> to vector<16x96xf32>
    %31 = arith.addf %28, %30 : vector<16x96xf32>
    %c256 = arith.constant 256 : index
    %c0_12 = arith.constant 0 : index
    %32 = vector.load %arg2[%c256, %c0_12] : memref<272x128xf32, #tpu.memory_space<vmem>>, vector<16x16xf32>
    %cst_13 = arith.constant 0.000000e+00 : f32
    %33 = vector.broadcast %cst_13 : f32 to vector<16x32xf32>
    %34 = vector.extract_strided_slice %31 {offsets = [0, 0], sizes = [16, 8], strides = [1, 1]} : vector<16x96xf32> to vector<16x8xf32>
    %35 = vector.extract_strided_slice %31 {offsets = [0, 32], sizes = [16, 8], strides = [1, 1]} : vector<16x96xf32> to vector<16x8xf32>
    %36 = vector.extract_strided_slice %31 {offsets = [0, 64], sizes = [16, 8], strides = [1, 1]} : vector<16x96xf32> to vector<16x8xf32>
    %cst_14 = arith.constant dense<0.000000e+00> : vector<16x16xf32>
    %37 = tpu.matmul %34, %35, %cst_14 {dimension_numbers = #tpu.dot_dimension_numbers<[1], [1], [0], [0], [0, 0, 1, 0], [], []>} : vector<16x8xf32>, vector<16x8xf32>, vector<16x16xf32> -> vector<16x16xf32>
    %38 = arith.addf %37, %32 : vector<16x16xf32>
    %39 = math.exp %38 : vector<16x16xf32>
    %cst_15 = arith.constant dense<0.000000e+00> : vector<16xf32>
    %40 = vector.multi_reduction <add>, %39, %cst_15 [1] : vector<16x16xf32> to vector<16xf32>
    %41 = vector.shape_cast %40 : vector<16xf32> to vector<16x1xf32>
    %42 = vector.broadcast %41 : vector<16x1xf32> to vector<16x16xf32>
    %43 = arith.divf %39, %42 : vector<16x16xf32>
    %cst_16 = arith.constant dense<0.000000e+00> : vector<16x8xf32>
    %44 = tpu.matmul %43, %36, %cst_16 {dimension_numbers = #tpu.dot_dimension_numbers<[1], [0], [0], [1], [0, 0, 1, 1], [], []>} : vector<16x16xf32>, vector<16x8xf32>, vector<16x8xf32> -> vector<16x8xf32>
    %c64 = arith.constant 64 : index
    %c0_17 = arith.constant 0 : index
    %45 = vector.load %arg2[%c64, %c0_17] : memref<272x128xf32, #tpu.memory_space<vmem>>, vector<8x32xf32>
    %cst_18 = arith.constant dense<0.000000e+00> : vector<16x32xf32>
    %46 = tpu.matmul %44, %45, %cst_18 {dimension_numbers = #tpu.dot_dimension_numbers<[1], [0], [0], [1], [0, 0, 1, 1], [], []>} : vector<16x8xf32>, vector<8x32xf32>, vector<16x32xf32> -> vector<16x32xf32>
    %47 = arith.addf %33, %46 : vector<16x32xf32>
    %48 = vector.extract_strided_slice %31 {offsets = [0, 8], sizes = [16, 8], strides = [1, 1]} : vector<16x96xf32> to vector<16x8xf32>
    %49 = vector.extract_strided_slice %31 {offsets = [0, 40], sizes = [16, 8], strides = [1, 1]} : vector<16x96xf32> to vector<16x8xf32>
    %50 = vector.extract_strided_slice %31 {offsets = [0, 72], sizes = [16, 8], strides = [1, 1]} : vector<16x96xf32> to vector<16x8xf32>
    %cst_19 = arith.constant dense<0.000000e+00> : vector<16x16xf32>
    %51 = tpu.matmul %48, %49, %cst_19 {dimension_numbers = #tpu.dot_dimension_numbers<[1], [1], [0], [0], [0, 0, 1, 0], [], []>} : vector<16x8xf32>, vector<16x8xf32>, vector<16x16xf32> -> vector<16x16xf32>
    %52 = arith.addf %51, %32 : vector<16x16xf32>
    %53 = math.exp %52 : vector<16x16xf32>
    %cst_20 = arith.constant dense<0.000000e+00> : vector<16xf32>
    %54 = vector.multi_reduction <add>, %53, %cst_20 [1] : vector<16x16xf32> to vector<16xf32>
    %55 = vector.shape_cast %54 : vector<16xf32> to vector<16x1xf32>
    %56 = vector.broadcast %55 : vector<16x1xf32> to vector<16x16xf32>
    %57 = arith.divf %53, %56 : vector<16x16xf32>
    %cst_21 = arith.constant dense<0.000000e+00> : vector<16x8xf32>
    %58 = tpu.matmul %57, %50, %cst_21 {dimension_numbers = #tpu.dot_dimension_numbers<[1], [0], [0], [1], [0, 0, 1, 1], [], []>} : vector<16x16xf32>, vector<16x8xf32>, vector<16x8xf32> -> vector<16x8xf32>
    %c72 = arith.constant 72 : index
    %c0_22 = arith.constant 0 : index
    %59 = vector.load %arg2[%c72, %c0_22] : memref<272x128xf32, #tpu.memory_space<vmem>>, vector<8x32xf32>
    %cst_23 = arith.constant dense<0.000000e+00> : vector<16x32xf32>
    %60 = tpu.matmul %58, %59, %cst_23 {dimension_numbers = #tpu.dot_dimension_numbers<[1], [0], [0], [1], [0, 0, 1, 1], [], []>} : vector<16x8xf32>, vector<8x32xf32>, vector<16x32xf32> -> vector<16x32xf32>
    %61 = arith.addf %47, %60 : vector<16x32xf32>
    %62 = vector.extract_strided_slice %31 {offsets = [0, 16], sizes = [16, 8], strides = [1, 1]} : vector<16x96xf32> to vector<16x8xf32>
    %63 = vector.extract_strided_slice %31 {offsets = [0, 48], sizes = [16, 8], strides = [1, 1]} : vector<16x96xf32> to vector<16x8xf32>
    %64 = vector.extract_strided_slice %31 {offsets = [0, 80], sizes = [16, 8], strides = [1, 1]} : vector<16x96xf32> to vector<16x8xf32>
    %cst_24 = arith.constant dense<0.000000e+00> : vector<16x16xf32>
    %65 = tpu.matmul %62, %63, %cst_24 {dimension_numbers = #tpu.dot_dimension_numbers<[1], [1], [0], [0], [0, 0, 1, 0], [], []>} : vector<16x8xf32>, vector<16x8xf32>, vector<16x16xf32> -> vector<16x16xf32>
    %66 = arith.addf %65, %32 : vector<16x16xf32>
    %67 = math.exp %66 : vector<16x16xf32>
    %cst_25 = arith.constant dense<0.000000e+00> : vector<16xf32>
    %68 = vector.multi_reduction <add>, %67, %cst_25 [1] : vector<16x16xf32> to vector<16xf32>
    %69 = vector.shape_cast %68 : vector<16xf32> to vector<16x1xf32>
    %70 = vector.broadcast %69 : vector<16x1xf32> to vector<16x16xf32>
    %71 = arith.divf %67, %70 : vector<16x16xf32>
    %cst_26 = arith.constant dense<0.000000e+00> : vector<16x8xf32>
    %72 = tpu.matmul %71, %64, %cst_26 {dimension_numbers = #tpu.dot_dimension_numbers<[1], [0], [0], [1], [0, 0, 1, 1], [], []>} : vector<16x16xf32>, vector<16x8xf32>, vector<16x8xf32> -> vector<16x8xf32>
    %c80 = arith.constant 80 : index
    %c0_27 = arith.constant 0 : index
    %73 = vector.load %arg2[%c80, %c0_27] : memref<272x128xf32, #tpu.memory_space<vmem>>, vector<8x32xf32>
    %cst_28 = arith.constant dense<0.000000e+00> : vector<16x32xf32>
    %74 = tpu.matmul %72, %73, %cst_28 {dimension_numbers = #tpu.dot_dimension_numbers<[1], [0], [0], [1], [0, 0, 1, 1], [], []>} : vector<16x8xf32>, vector<8x32xf32>, vector<16x32xf32> -> vector<16x32xf32>
    %75 = arith.addf %61, %74 : vector<16x32xf32>
    %76 = vector.extract_strided_slice %31 {offsets = [0, 24], sizes = [16, 8], strides = [1, 1]} : vector<16x96xf32> to vector<16x8xf32>
    %77 = vector.extract_strided_slice %31 {offsets = [0, 56], sizes = [16, 8], strides = [1, 1]} : vector<16x96xf32> to vector<16x8xf32>
    %78 = vector.extract_strided_slice %31 {offsets = [0, 88], sizes = [16, 8], strides = [1, 1]} : vector<16x96xf32> to vector<16x8xf32>
    %cst_29 = arith.constant dense<0.000000e+00> : vector<16x16xf32>
    %79 = tpu.matmul %76, %77, %cst_29 {dimension_numbers = #tpu.dot_dimension_numbers<[1], [1], [0], [0], [0, 0, 1, 0], [], []>} : vector<16x8xf32>, vector<16x8xf32>, vector<16x16xf32> -> vector<16x16xf32>
    %80 = arith.addf %79, %32 : vector<16x16xf32>
    %81 = math.exp %80 : vector<16x16xf32>
    %cst_30 = arith.constant dense<0.000000e+00> : vector<16xf32>
    %82 = vector.multi_reduction <add>, %81, %cst_30 [1] : vector<16x16xf32> to vector<16xf32>
    %83 = vector.shape_cast %82 : vector<16xf32> to vector<16x1xf32>
    %84 = vector.broadcast %83 : vector<16x1xf32> to vector<16x16xf32>
    %85 = arith.divf %81, %84 : vector<16x16xf32>
    %cst_31 = arith.constant dense<0.000000e+00> : vector<16x8xf32>
    %86 = tpu.matmul %85, %78, %cst_31 {dimension_numbers = #tpu.dot_dimension_numbers<[1], [0], [0], [1], [0, 0, 1, 1], [], []>} : vector<16x16xf32>, vector<16x8xf32>, vector<16x8xf32> -> vector<16x8xf32>
    %c88 = arith.constant 88 : index
    %c0_32 = arith.constant 0 : index
    %87 = vector.load %arg2[%c88, %c0_32] : memref<272x128xf32, #tpu.memory_space<vmem>>, vector<8x32xf32>
    %cst_33 = arith.constant dense<0.000000e+00> : vector<16x32xf32>
    %88 = tpu.matmul %86, %87, %cst_33 {dimension_numbers = #tpu.dot_dimension_numbers<[1], [0], [0], [1], [0, 0, 1, 1], [], []>} : vector<16x8xf32>, vector<8x32xf32>, vector<16x32xf32> -> vector<16x32xf32>
    %89 = arith.addf %75, %88 : vector<16x32xf32>
    %90 = arith.addf %2, %89 : vector<16x32xf32>
    %c23 = arith.constant 23 : index
    %c0_34 = arith.constant 0 : index
    %91 = vector.load %arg2[%c23, %c0_34] : memref<272x128xf32, #tpu.memory_space<vmem>>, vector<1x32xf32>
    %92 = vector.broadcast %91 : vector<1x32xf32> to vector<16x32xf32>
    %93 = arith.addf %90, %92 : vector<16x32xf32>
    %c18 = arith.constant 18 : index
    %c0_35 = arith.constant 0 : index
    %94 = vector.load %arg2[%c18, %c0_35] : memref<272x128xf32, #tpu.memory_space<vmem>>, vector<1x32xf32>
    %c19 = arith.constant 19 : index
    %c0_36 = arith.constant 0 : index
    %95 = vector.load %arg2[%c19, %c0_36] : memref<272x128xf32, #tpu.memory_space<vmem>>, vector<1x32xf32>
    %cst_37 = arith.constant dense<0.000000e+00> : vector<16xf32>
    %96 = vector.multi_reduction <add>, %93, %cst_37 [1] : vector<16x32xf32> to vector<16xf32>
    %97 = vector.shape_cast %96 : vector<16xf32> to vector<16x1xf32>
    %cst_38 = arith.constant 3.200000e+01 : f32
    %98 = vector.broadcast %cst_38 : f32 to vector<16x1xf32>
    %99 = arith.divf %97, %98 : vector<16x1xf32>
    %100 = vector.broadcast %99 : vector<16x1xf32> to vector<16x32xf32>
    %101 = arith.subf %93, %100 : vector<16x32xf32>
    %102 = arith.mulf %101, %101 : vector<16x32xf32>
    %cst_39 = arith.constant dense<0.000000e+00> : vector<16xf32>
    %103 = vector.multi_reduction <add>, %102, %cst_39 [1] : vector<16x32xf32> to vector<16xf32>
    %104 = vector.shape_cast %103 : vector<16xf32> to vector<16x1xf32>
    %cst_40 = arith.constant 3.200000e+01 : f32
    %105 = vector.broadcast %cst_40 : f32 to vector<16x1xf32>
    %106 = arith.divf %104, %105 : vector<16x1xf32>
    %107 = vector.broadcast %99 : vector<16x1xf32> to vector<16x32xf32>
    %108 = arith.subf %93, %107 : vector<16x32xf32>
    %cst_41 = arith.constant 9.99999974E-6 : f32
    %109 = vector.broadcast %cst_41 : f32 to vector<16x1xf32>
    %110 = arith.addf %106, %109 : vector<16x1xf32>
    %111 = math.rsqrt %110 : vector<16x1xf32>
    %112 = vector.broadcast %111 : vector<16x1xf32> to vector<16x32xf32>
    %113 = arith.mulf %108, %112 : vector<16x32xf32>
    %114 = vector.broadcast %94 : vector<1x32xf32> to vector<16x32xf32>
    %115 = arith.mulf %113, %114 : vector<16x32xf32>
    %116 = vector.broadcast %95 : vector<1x32xf32> to vector<16x32xf32>
    %117 = arith.addf %115, %116 : vector<16x32xf32>
    %c96 = arith.constant 96 : index
    %c0_42 = arith.constant 0 : index
    %118 = vector.load %arg2[%c96, %c0_42] : memref<272x128xf32, #tpu.memory_space<vmem>>, vector<32x128xf32>
    %cst_43 = arith.constant dense<0.000000e+00> : vector<16x128xf32>
    %119 = tpu.matmul %117, %118, %cst_43 {dimension_numbers = #tpu.dot_dimension_numbers<[1], [0], [0], [1], [0, 0, 1, 1], [], []>} : vector<16x32xf32>, vector<32x128xf32>, vector<16x128xf32> -> vector<16x128xf32>
    %c24 = arith.constant 24 : index
    %c0_44 = arith.constant 0 : index
    %120 = vector.load %arg2[%c24, %c0_44] : memref<272x128xf32, #tpu.memory_space<vmem>>, vector<1x128xf32>
    %121 = vector.broadcast %120 : vector<1x128xf32> to vector<16x128xf32>
    %122 = arith.addf %119, %121 : vector<16x128xf32>
    %cst_45 = arith.constant 5.000000e-01 : f32
    %123 = vector.broadcast %cst_45 : f32 to vector<16x128xf32>
    %124 = arith.mulf %123, %122 : vector<16x128xf32>
    %cst_46 = arith.constant 4.471500e-02 : f32
    %125 = vector.broadcast %cst_46 : f32 to vector<16x128xf32>
    %126 = arith.mulf %125, %122 : vector<16x128xf32>
    %127 = arith.mulf %126, %122 : vector<16x128xf32>
    %128 = arith.mulf %127, %122 : vector<16x128xf32>
    %129 = arith.addf %122, %128 : vector<16x128xf32>
    %cst_47 = arith.constant 0.797884583 : f32
    %130 = vector.broadcast %cst_47 : f32 to vector<16x128xf32>
    %131 = arith.mulf %130, %129 : vector<16x128xf32>
    %132 = math.tanh %131 : vector<16x128xf32>
    %cst_48 = arith.constant 1.000000e+00 : f32
    %133 = vector.broadcast %cst_48 : f32 to vector<16x128xf32>
    %134 = arith.addf %133, %132 : vector<16x128xf32>
    %135 = arith.mulf %124, %134 : vector<16x128xf32>
    %c128 = arith.constant 128 : index
    %c0_49 = arith.constant 0 : index
    %136 = vector.load %arg2[%c128, %c0_49] : memref<272x128xf32, #tpu.memory_space<vmem>>, vector<128x32xf32>
    %cst_50 = arith.constant dense<0.000000e+00> : vector<16x32xf32>
    %137 = tpu.matmul %135, %136, %cst_50 {dimension_numbers = #tpu.dot_dimension_numbers<[1], [0], [0], [1], [0, 0, 1, 1], [], []>} : vector<16x128xf32>, vector<128x32xf32>, vector<16x32xf32> -> vector<16x32xf32>
    %c25 = arith.constant 25 : index
    %c0_51 = arith.constant 0 : index
    %138 = vector.load %arg2[%c25, %c0_51] : memref<272x128xf32, #tpu.memory_space<vmem>>, vector<1x32xf32>
    %139 = vector.broadcast %138 : vector<1x32xf32> to vector<16x32xf32>
    %140 = arith.addf %137, %139 : vector<16x32xf32>
    %141 = arith.addf %93, %140 : vector<16x32xf32>
    %c20 = arith.constant 20 : index
    %c0_52 = arith.constant 0 : index
    %142 = vector.load %arg2[%c20, %c0_52] : memref<272x128xf32, #tpu.memory_space<vmem>>, vector<1x32xf32>
    %c21 = arith.constant 21 : index
    %c0_53 = arith.constant 0 : index
    %143 = vector.load %arg2[%c21, %c0_53] : memref<272x128xf32, #tpu.memory_space<vmem>>, vector<1x32xf32>
    %cst_54 = arith.constant dense<0.000000e+00> : vector<16xf32>
    %144 = vector.multi_reduction <add>, %141, %cst_54 [1] : vector<16x32xf32> to vector<16xf32>
    %145 = vector.shape_cast %144 : vector<16xf32> to vector<16x1xf32>
    %cst_55 = arith.constant 3.200000e+01 : f32
    %146 = vector.broadcast %cst_55 : f32 to vector<16x1xf32>
    %147 = arith.divf %145, %146 : vector<16x1xf32>
    %148 = vector.broadcast %147 : vector<16x1xf32> to vector<16x32xf32>
    %149 = arith.subf %141, %148 : vector<16x32xf32>
    %150 = arith.mulf %149, %149 : vector<16x32xf32>
    %cst_56 = arith.constant dense<0.000000e+00> : vector<16xf32>
    %151 = vector.multi_reduction <add>, %150, %cst_56 [1] : vector<16x32xf32> to vector<16xf32>
    %152 = vector.shape_cast %151 : vector<16xf32> to vector<16x1xf32>
    %cst_57 = arith.constant 3.200000e+01 : f32
    %153 = vector.broadcast %cst_57 : f32 to vector<16x1xf32>
    %154 = arith.divf %152, %153 : vector<16x1xf32>
    %155 = vector.broadcast %147 : vector<16x1xf32> to vector<16x32xf32>
    %156 = arith.subf %141, %155 : vector<16x32xf32>
    %cst_58 = arith.constant 9.99999974E-6 : f32
    %157 = vector.broadcast %cst_58 : f32 to vector<16x1xf32>
    %158 = arith.addf %154, %157 : vector<16x1xf32>
    %159 = math.rsqrt %158 : vector<16x1xf32>
    %160 = vector.broadcast %159 : vector<16x1xf32> to vector<16x32xf32>
    %161 = arith.mulf %156, %160 : vector<16x32xf32>
    %162 = vector.broadcast %142 : vector<1x32xf32> to vector<16x32xf32>
    %163 = arith.mulf %161, %162 : vector<16x32xf32>
    %164 = vector.broadcast %143 : vector<1x32xf32> to vector<16x32xf32>
    %165 = arith.addf %163, %164 : vector<16x32xf32>
    %c0_59 = arith.constant 0 : index
    %c0_60 = arith.constant 0 : index
    %166 = vector.load %arg3[%c0_59, %c0_60] : memref<16x32xf32, #tpu.memory_space<vmem>>, vector<16x32xf32>
    tpu.vector_store %arg3[%c0_59, %c0_60], %165 {strides = array<i32>} : memref<16x32xf32, #tpu.memory_space<vmem>>, vector<16x32xf32>,
    return
  }
  func.func @transform_0(%arg0: i32) -> (i32, i32) {
    %c0_i32 = arith.constant 0 : i32
    %c0_i32_0 = arith.constant 0 : i32
    return %arg0, %c0_i32 : i32, i32
  }
  func.func @transform_1(%arg0: i32) -> (i32, i32) {
    %c0_i32 = arith.constant 0 : i32
    %c0_i32_0 = arith.constant 0 : i32
    %c0_i32_1 = arith.constant 0 : i32
    return %c0_i32, %c0_i32_0 : i32, i32
  }
  func.func @transform_2(%arg0: i32) -> (i32, i32) {
    %c0_i32 = arith.constant 0 : i32
    %c0_i32_0 = arith.constant 0 : i32
    return %arg0, %c0_i32 : i32, i32
  }
}

</mosaic_0001>

<llo_original>
// kernel: plan_model_forward.1
$region0: #{plan_model_forward.1}
  #allocation0 [shape = 'u32[]', space=smem, size = 0x4, offset = 0x4, fixed_abs, tag = 'smem constant byte address 0x4 - core index']
  #allocation1 [shape = 'u32[144,128]{1,0:T(1,128)}', space=vmem, size = 0x12000, scoped, tag = 'internal scratch']
  %s0 = inlined_call_operand.hbm [shape: f32[16,32], index: 0, kind: input, shape index: {}]
  %s1 = inlined_call_operand.hbm [shape: f32[272,128], index: 1, kind: input, shape index: {}]
  %s2 = inlined_call_operand.vmem [shape: f32[16,32], index: 2, kind: output, shape index: {}]
  %s3 = sld [smem:[#allocation0]]
  $region26: #{plan_model_forward.1} parent=0
    _
  %s5 = ssub.s32 1, %s3
  %s6 = scalar_select 0, %s5, %s3
  $region1: #{plan_model_forward.1} parent=0
    #allocation2 [shape = 'u8[8192]{0}', space=vmem, size = 0x2000, scoped, tag = 'input window, operand 0, single buffered']
    #allocation3 [shape = 's32[1]{0}', space=sflag, size = 0x4, scoped, tag = 'scoped memory for plan_model_forward.1']
    #allocation4 [shape = 'u8[139264]{0}', space=vmem, size = 0x22000, scoped, tag = 'input window, operand 1, single buffered']
    #allocation5 [shape = 's32[1]{0}', space=sflag, size = 0x4, scoped, tag = 'scoped memory for plan_model_forward.1']
    %7 = vsyncpa [#allocation3], 0
    %8 = vsyncpa [#allocation5], 0
    // Predicated region
    $region2: #{plan_model_forward.1} parent=1 // pred_check
      _
    $region3: #{plan_model_forward.1} parent=1 // pred_check_branch
      %10 = sbr.rel (0) target = $region5
    $region4: #{plan_model_forward.1} parent=1 // pred_region
      %s12 = ssub.s32 256, 256
      %13 = vsyncadd [#allocation3], %s12
      %s14 = sshll.u32 [#allocation2], 4
      %s15 = int_to_ptr.vmem [resolvable:$true] %s14
      %20 = dma.hbm_to_vmem [thread:$0]  %s0, 256, %s15, [#allocation3], 128, 128, 8
    $region5: #{plan_model_forward.1} parent=1 // pred_fallthru
      _
    // Predicated region
    $region6: #{plan_model_forward.1} parent=1 // pred_check
      _
    $region7: #{plan_model_forward.1} parent=1 // pred_check_branch
      %22 = sbr.rel (0) target = $region9
    $region8: #{plan_model_forward.1} parent=1 // pred_region
      %s24 = ssub.s32 4352, 4352
      %25 = vsyncadd [#allocation5], %s24
      %s26 = sshll.u32 [#allocation4], 4
      %s27 = int_to_ptr.vmem [resolvable:$true] %s26
      %32 = dma.hbm_to_vmem [thread:$0]  %s1, 4352, %s27, [#allocation5], 128, 128, 8
    $region9: #{plan_model_forward.1} parent=1 // pred_fallthru
      _
    // Predicated region
    $region10: #{plan_model_forward.1} parent=1 // pred_check
      _
    $region11: #{plan_model_forward.1} parent=1 // pred_check_branch
      %34 = sbr.rel (0) target = $region13
    $region12: #{plan_model_forward.1} parent=1 // pred_region
      %35 = dma.done [#allocation3], 256
    $region13: #{plan_model_forward.1} parent=1 // pred_fallthru
      _
    // Predicated region
    $region14: #{plan_model_forward.1} parent=1 // pred_check
      _
    $region15: #{plan_model_forward.1} parent=1 // pred_check_branch
      %37 = sbr.rel (0) target = $region17
    $region16: #{plan_model_forward.1} parent=1 // pred_region
      %38 = dma.done [#allocation5], 4352
    $region17: #{plan_model_forward.1} parent=1 // pred_fallthru
      _
    %v39 = vld [vmem:[#allocation2] sm:$0xff]
    %v40 = vld [vmem:[#allocation2 + $0x8] sm:$0xff]
    %v41 = vld [vmem:[#allocation4] sm:$0xff]
    %v42 = vld [vmem:[#allocation4 + $0x8] sm:$0xff]
    %v43 = vadd.f32 %v39, %v41
    %v44 = vadd.f32 %v40, %v42
    %v45 = vld [vmem:[#allocation4 + $0x10] sm:$0x1]
    %v46 = vld [vmem:[#allocation4 + $0x11] sm:$0x1]
    %vm47 = vcmask 261120
    %v48 = vsel %vm47, %v43, 0.0
    %49 = vadd.xlane.f32.xlu0 %v48
    %v50 = vpop.xlane.xlu0 %49
    %v51 = vsel %vm47, %v44, 0.0
    %52 = vadd.xlane.f32.xlu0 %v51
    %v53 = vpop.xlane.xlu0 %52
    %v54 = vrcp.pop 32.0
    %v55 = vmul.f32 %v50, %v54
    %v56 = vmul.f32 %v53, %v54
    %v57 = vsub.f32 %v43, %v55
    %v58 = vsub.f32 %v44, %v56
    %v59 = vmul.f32 %v57, %v57
    %v60 = vmul.f32 %v58, %v58
    %v61 = vsel %vm47, %v59, 0.0
    %62 = vadd.xlane.f32.xlu0 %v61
    %v63 = vpop.xlane.xlu0 %62
    %v64 = vsel %vm47, %v60, 0.0
    %65 = vadd.xlane.f32.xlu0 %v64
    %v66 = vpop.xlane.xlu0 %65
    %v67 = vmul.f32 %v63, %v54
    %v68 = vmul.f32 %v66, %v54
    %v69 = vadd.f32 %v67, 1e-05
    %v70 = vadd.f32 %v68, 1e-05
    %v71 = vrsqrt.pop %v69
    %v72 = vrsqrt.pop %v70
    %v73 = vmul.f32 %v57, %v71
    %v74 = vmul.f32 %v58, %v72
    %v75 = vlaneseq
    %v76 = vshrl.u32 %v75, 7
    %v77 = vsub.s32 0, %v76
    %v78 = vrot.slane %v45, %v77
    %v79 = vmul.f32 %v73, %v78
    %v80 = vmul.f32 %v74, %v78
    %v81 = vlaneseq
    %v82 = vshrl.u32 %v81, 7
    %v83 = vsub.s32 0, %v82
    %v84 = vrot.slane %v46, %v83
    %v85 = vadd.f32 %v79, %v84
    %v86 = vadd.f32 %v80, %v84
    %v87 = vld [vmem:[#allocation4 + $0x20] sm:$0xff]
    %v88 = vld [vmem:[#allocation4 + $0x28] sm:$0xff]
    %v89 = vld [vmem:[#allocation4 + $0x30] sm:$0xff]
    %v90 = vld [vmem:[#allocation4 + $0x38] sm:$0xff]
    %v91 = vld [vmem:[#allocation4 + $0x16] sm:$0x1]
    %v92 = vlaneseq
    %v93 = vshrl.u32 %v92, 7
    %v94 = vsub.s32 0, %v93
    %v95 = vrot.slane %v91, %v94
    %v97 = vsel %vm47, %v85, 0
    %v100 = vsel %vm47, %v86, 0
    %102 = vmatprep.subr.mxu0 0.0
    %103 = vmatpush1.msra.mxu0 0.0
    %104 = vmatprep.subr.mxu0 0.0
    %105 = vmatpush1.msra.mxu0 0.0
    %106 = vmatprep.subr.mxu0 0.0
    %107 = vmatpush1.msra.mxu0 0.0
    %108 = vmatprep.subr.mxu0 0.0
    %109 = vmatpush1.msra.mxu0 0.0
    %110 = vmatprep.subr.mxu0 0.0
    %111 = vmatpush1.msra.mxu0 0.0
    %112 = vmatprep.subr.mxu0 0.0
    %113 = vmatpush1.msra.mxu0 0.0
    %114 = vmatprep.subr.mxu0 0.0
    %115 = vmatpush1.msra.mxu0 0.0
    %116 = vmatprep.subr.mxu0 0.0
    %117 = vmatpush1.msra.mxu0 0.0
    %118 = vmatprep.subr.mxu0 0.0
    %119 = vmatpush1.msra.mxu0 0.0
    %120 = vmatprep.subr.mxu0 0.0
    %121 = vmatpush1.msra.mxu0 0.0
    %122 = vmatprep.subr.mxu0 0.0
    %123 = vmatpush1.msra.mxu0 0.0
    %124 = vmatprep.subr.mxu0 0.0
    %125 = vmatpush1.msra.mxu0 0.0
    %126 = vmatprep.subr.mxu0 0.0
    %127 = vmatpush1.msra.mxu0 %v90
    %128 = vmatprep.subr.mxu0 0.0
    %129 = vmatpush1.msra.mxu0 %v89
    %130 = vmatprep.subr.mxu0 0.0
    %131 = vmatpush1.msra.mxu0 %v88
    %132 = vmatprep.subr.mxu0 0.0
    %133 = vmatpush1.msra.mxu0 %v87
    %134 = vmatprep.subr.mxu0 0.0
    %135 = vmatpush2.msra.mxu0 0.0
    %136 = vmatprep.subr.mxu0 0.0
    %137 = vmatpush2.msra.mxu0 0.0
    %138 = vmatprep.subr.mxu0 0.0
    %139 = vmatpush2.msra.mxu0 0.0
    %140 = vmatprep.subr.mxu0 0.0
    %141 = vmatpush2.msra.mxu0 0.0
    %142 = vmatprep.subr.mxu0 0.0
    %143 = vmatpush2.msra.mxu0 0.0
    %144 = vmatprep.subr.mxu0 0.0
    %145 = vmatpush2.msra.mxu0 0.0
    %146 = vmatprep.subr.mxu0 0.0
    %147 = vmatpush2.msra.mxu0 0.0
    %148 = vmatprep.subr.mxu0 0.0
    %149 = vmatpush2.msra.mxu0 0.0
    %150 = vmatprep.subr.mxu0 0.0
    %151 = vmatpush2.msra.mxu0 0.0
    %152 = vmatprep.subr.mxu0 0.0
    %153 = vmatpush2.msra.mxu0 0.0
    %154 = vmatprep.subr.mxu0 0.0
    %155 = vmatpush2.msra.mxu0 0.0
    %156 = vmatprep.subr.mxu0 0.0
    %157 = vmatpush2.msra.mxu0 0.0
    %158 = vmatprep.subr.mxu0 0.0
    %159 = vmatpush2.msra.mxu0 0.0
    %160 = vmatprep.subr.mxu0 0.0
    %161 = vmatpush2.msra.mxu0 0.0
    %162 = vmatprep.subr.mxu0 0.0
    %163 = vmatpush2.msra.mxu0 0.0
    %164 = vmatprep.subr.mxu0 0.0
    %165 = vmatpush2.msra.mxu0 0.0
    %166 = vmatprep.mubr.f32.mxu0 0.0
    %167 = vmatmul.mubr.f32.gmra.mxu0 %v97
    %v168 = vpop.f32.mrf.mxu0
    %v169 = vadd.f32 %v95, %v168
    %v170 = vpop.f32.mrf.mxu0
    %171 = vmatprep.mubr.f32.mxu0 0.0
    %172 = vmatmul.mubr.f32.gmra.mxu0 %v100
    %v173 = vpop.f32.mrf.mxu0
    %v174 = vadd.f32 %v95, %v173
    %v175 = vpop.f32.mrf.mxu0
    %176 = vdwg.mxu0
    %v177 = vld [vmem:[#allocation4 + $0x100] sm:$0xff]
    %v178 = vld [vmem:[#allocation4 + $0x108] sm:$0xff]
    %181 = vrot.lane.b32.xlu0 %v169, 96
    %v182 = vpop.permute.xlu0 %181
    %183 = vrot.lane.b32.xlu0 %v174, 96
    %v184 = vpop.permute.xlu0 %183
    %vm185 = vcmask 64512
    %v186 = vsel %vm185, %v169, 0
    %v188 = vsel %vm185, %v174, 0
    %v190 = vsel %vm185, %v182, 0
    %v192 = vsel %vm185, %v184, 0
    %194 = vmatprep.subr.mxu0 0.0
    %195 = vmatpush1.xpose.msra.mxu0 0.0
    %196 = vmatprep.subr.mxu0 0.0
    %197 = vmatpush1.xpose.msra.mxu0 0.0
    %198 = vmatprep.subr.mxu0 0.0
    %199 = vmatpush1.xpose.msra.mxu0 0.0
    %200 = vmatprep.subr.mxu0 0.0
    %201 = vmatpush1.xpose.msra.mxu0 0.0
    %202 = vmatprep.subr.mxu0 0.0
    %203 = vmatpush1.xpose.msra.mxu0 0.0
    %204 = vmatprep.subr.mxu0 0.0
    %205 = vmatpush1.xpose.msra.mxu0 0.0
    %206 = vmatprep.subr.mxu0 0.0
    %207 = vmatpush1.xpose.msra.mxu0 0.0
    %208 = vmatprep.subr.mxu0 0.0
    %209 = vmatpush1.xpose.msra.mxu0 0.0
    %210 = vmatprep.subr.mxu0 0.0
    %211 = vmatpush1.xpose.msra.mxu0 0.0
    %212 = vmatprep.subr.mxu0 0.0
    %213 = vmatpush1.xpose.msra.mxu0 0.0
    %214 = vmatprep.subr.mxu0 0.0
    %215 = vmatpush1.xpose.msra.mxu0 0.0
    %216 = vmatprep.subr.mxu0 0.0
    %217 = vmatpush1.xpose.msra.mxu0 0.0
    %218 = vmatprep.subr.mxu0 0.0
    %219 = vmatpush1.xpose.msra.mxu0 0.0
    %220 = vmatprep.subr.mxu0 0.0
    %221 = vmatpush1.xpose.msra.mxu0 0.0
    %222 = vmatprep.subr.mxu0 0.0
    %223 = vmatpush1.xpose.msra.mxu0 %v192
    %224 = vmatprep.subr.mxu0 0.0
    %225 = vmatpush1.xpose.msra.mxu0 %v190
    %226 = vmatprep.subr.mxu0 0.0
    %227 = vmatpush2.xpose.msra.mxu0 0.0
    %228 = vmatprep.subr.mxu0 0.0
    %229 = vmatpush2.xpose.msra.mxu0 0.0
    %230 = vmatprep.subr.mxu0 0.0
    %231 = vmatpush2.xpose.msra.mxu0 0.0
    %232 = vmatprep.subr.mxu0 0.0
    %233 = vmatpush2.xpose.msra.mxu0 0.0
    %234 = vmatprep.subr.mxu0 0.0
    %235 = vmatpush2.xpose.msra.mxu0 0.0
    %236 = vmatprep.subr.mxu0 0.0
    %237 = vmatpush2.xpose.msra.mxu0 0.0
    %238 = vmatprep.subr.mxu0 0.0
    %239 = vmatpush2.xpose.msra.mxu0 0.0
    %240 = vmatprep.subr.mxu0 0.0
    %241 = vmatpush2.xpose.msra.mxu0 0.0
    %242 = vmatprep.subr.mxu0 0.0
    %243 = vmatpush2.xpose.msra.mxu0 0.0
    %244 = vmatprep.subr.mxu0 0.0
    %245 = vmatpush2.xpose.msra.mxu0 0.0
    %246 = vmatprep.subr.mxu0 0.0
    %247 = vmatpush2.xpose.msra.mxu0 0.0
    %248 = vmatprep.subr.mxu0 0.0
    %249 = vmatpush2.xpose.msra.mxu0 0.0
    %250 = vmatprep.subr.mxu0 0.0
    %251 = vmatpush2.xpose.msra.mxu0 0.0
    %252 = vmatprep.subr.mxu0 0.0
    %253 = vmatpush2.xpose.msra.mxu0 0.0
    %254 = vmatprep.subr.mxu0 0.0
    %255 = vmatpush2.xpose.msra.mxu0 0.0
    %256 = vmatprep.subr.mxu0 0.0
    %257 = vmatpush2.xpose.msra.mxu0 0.0
    %258 = vmatprep.mubr.f32.mxu0 0.0
    %259 = vmatmul.mubr.f32.gmra.mxu0 %v186
    %v260 = vpop.f32.mrf.mxu0
    %v261 = vadd.f32 %v177, %v260
    %v262 = vpop.f32.mrf.mxu0
    %263 = vmatprep.mubr.f32.mxu0 0.0
    %264 = vmatmul.mubr.f32.gmra.mxu0 %v188
    %v265 = vpop.f32.mrf.mxu0
    %v266 = vadd.f32 %v178, %v265
    %v267 = vpop.f32.mrf.mxu0
    %268 = vdwg.mxu0
    %v269 = vmul.f32 %v261, 1.442695
    %v270 = vpow.pop %v269
    %v271 = vmul.f32 %v266, 1.442695
    %v272 = vpow.pop %v271
    %vm273 = vcmask 130048
    %v274 = vsel %vm273, %v270, 0.0
    %275 = vadd.xlane.f32.xlu0 %v274
    %v276 = vpop.xlane.xlu0 %275
    %v277 = vsel %vm273, %v272, 0.0
    %278 = vadd.xlane.f32.xlu0 %v277
    %v279 = vpop.xlane.xlu0 %278
    %v280 = vrcp.pop %v276
    %v281 = vmul.f32 %v270, %v280
    %v282 = vrcp.pop %v279
    %v283 = vmul.f32 %v272, %v282
    %284 = vrot.lane.b32.xlu0 %v169, 64
    %v285 = vpop.permute.xlu0 %284
    %286 = vrot.lane.b32.xlu0 %v174, 64
    %v287 = vpop.permute.xlu0 %286
    %v291 = vsel %vm273, %v281, 0
    %v294 = vsel %vm273, %v283, 0
    %296 = vmatprep.subr.mxu0 0.0
    %297 = vmatpush1.msra.mxu0 0.0
    %298 = vmatprep.subr.mxu0 0.0
    %299 = vmatpush1.msra.mxu0 0.0
    %300 = vmatprep.subr.mxu0 0.0
    %301 = vmatpush1.msra.mxu0 0.0
    %302 = vmatprep.subr.mxu0 0.0
    %303 = vmatpush1.msra.mxu0 0.0
    %304 = vmatprep.subr.mxu0 0.0
    %305 = vmatpush1.msra.mxu0 0.0
    %306 = vmatprep.subr.mxu0 0.0
    %307 = vmatpush1.msra.mxu0 0.0
    %308 = vmatprep.subr.mxu0 0.0
    %309 = vmatpush1.msra.mxu0 0.0
    %310 = vmatprep.subr.mxu0 0.0
    %311 = vmatpush1.msra.mxu0 0.0
    %312 = vmatprep.subr.mxu0 0.0
    %313 = vmatpush1.msra.mxu0 0.0
    %314 = vmatprep.subr.mxu0 0.0
    %315 = vmatpush1.msra.mxu0 0.0
    %316 = vmatprep.subr.mxu0 0.0
    %317 = vmatpush1.msra.mxu0 0.0
    %318 = vmatprep.subr.mxu0 0.0
    %319 = vmatpush1.msra.mxu0 0.0
    %320 = vmatprep.subr.mxu0 0.0
    %321 = vmatpush1.msra.mxu0 0.0
    %322 = vmatprep.subr.mxu0 0.0
    %323 = vmatpush1.msra.mxu0 0.0
    %324 = vmatprep.subr.mxu0 0.0
    %325 = vmatpush1.msra.mxu0 %v287
    %326 = vmatprep.subr.mxu0 0.0
    %327 = vmatpush1.msra.mxu0 %v285
    %328 = vmatprep.subr.mxu0 0.0
    %329 = vmatpush2.msra.mxu0 0.0
    %330 = vmatprep.subr.mxu0 0.0
    %331 = vmatpush2.msra.mxu0 0.0
    %332 = vmatprep.subr.mxu0 0.0
    %333 = vmatpush2.msra.mxu0 0.0
    %334 = vmatprep.subr.mxu0 0.0
    %335 = vmatpush2.msra.mxu0 0.0
    %336 = vmatprep.subr.mxu0 0.0
    %337 = vmatpush2.msra.mxu0 0.0
    %338 = vmatprep.subr.mxu0 0.0
    %339 = vmatpush2.msra.mxu0 0.0
    %340 = vmatprep.subr.mxu0 0.0
    %341 = vmatpush2.msra.mxu0 0.0
    %342 = vmatprep.subr.mxu0 0.0
    %343 = vmatpush2.msra.mxu0 0.0
    %344 = vmatprep.subr.mxu0 0.0
    %345 = vmatpush2.msra.mxu0 0.0
    %346 = vmatprep.subr.mxu0 0.0
    %347 = vmatpush2.msra.mxu0 0.0
    %348 = vmatprep.subr.mxu0 0.0
    %349 = vmatpush2.msra.mxu0 0.0
    %350 = vmatprep.subr.mxu0 0.0
    %351 = vmatpush2.msra.mxu0 0.0
    %352 = vmatprep.subr.mxu0 0.0
    %353 = vmatpush2.msra.mxu0 0.0
    %354 = vmatprep.subr.mxu0 0.0
    %355 = vmatpush2.msra.mxu0 0.0
    %356 = vmatprep.subr.mxu0 0.0
    %357 = vmatpush2.msra.mxu0 0.0
    %358 = vmatprep.subr.mxu0 0.0
    %359 = vmatpush2.msra.mxu0 0.0
    %360 = vmatprep.mubr.f32.mxu0 0.0
    %361 = vmatmul.mubr.f32.gmra.mxu0 %v291
    %v362 = vpop.f32.mrf.mxu0
    %v363 = vadd.f32 0.0, %v362
    %v364 = vpop.f32.mrf.mxu0
    %365 = vmatprep.mubr.f32.mxu0 0.0
    %366 = vmatmul.mubr.f32.gmra.mxu0 %v294
    %v367 = vpop.f32.mrf.mxu0
    %v368 = vadd.f32 0.0, %v367
    %v369 = vpop.f32.mrf.mxu0
    %370 = vdwg.mxu0
    %v371 = vld [vmem:[#allocation4 + $0x40] sm:$0xff]
    %372 = vrot.lane.b32.xlu0 %v169, 120
    %v373 = vpop.permute.xlu0 %372
    %374 = vrot.lane.b32.xlu0 %v174, 120
    %v375 = vpop.permute.xlu0 %374
    %376 = vrot.lane.b32.xlu0 %v169, 88
    %v377 = vpop.permute.xlu0 %376
    %378 = vrot.lane.b32.xlu0 %v174, 88
    %v379 = vpop.permute.xlu0 %378
    %v380 = vsel %vm185, %v373, 0
    %v382 = vsel %vm185, %v375, 0
    %v384 = vsel %vm185, %v377, 0
    %v386 = vsel %vm185, %v379, 0
    %388 = vmatprep.subr.mxu0 0.0
    %389 = vmatpush1.xpose.msra.mxu0 0.0
    %390 = vmatprep.subr.mxu0 0.0
    %391 = vmatpush1.xpose.msra.mxu0 0.0
    %392 = vmatprep.subr.mxu0 0.0
    %393 = vmatpush1.xpose.msra.mxu0 0.0
    %394 = vmatprep.subr.mxu0 0.0
    %395 = vmatpush1.xpose.msra.mxu0 0.0
    %396 = vmatprep.subr.mxu0 0.0
    %397 = vmatpush1.xpose.msra.mxu0 0.0
    %398 = vmatprep.subr.mxu0 0.0
    %399 = vmatpush1.xpose.msra.mxu0 0.0
    %400 = vmatprep.subr.mxu0 0.0
    %401 = vmatpush1.xpose.msra.mxu0 0.0
    %402 = vmatprep.subr.mxu0 0.0
    %403 = vmatpush1.xpose.msra.mxu0 0.0
    %404 = vmatprep.subr.mxu0 0.0
    %405 = vmatpush1.xpose.msra.mxu0 0.0
    %406 = vmatprep.subr.mxu0 0.0
    %407 = vmatpush1.xpose.msra.mxu0 0.0
    %408 = vmatprep.subr.mxu0 0.0
    %409 = vmatpush1.xpose.msra.mxu0 0.0
    %410 = vmatprep.subr.mxu0 0.0
    %411 = vmatpush1.xpose.msra.mxu0 0.0
    %412 = vmatprep.subr.mxu0 0.0
    %413 = vmatpush1.xpose.msra.mxu0 0.0
    %414 = vmatprep.subr.mxu0 0.0
    %415 = vmatpush1.xpose.msra.mxu0 0.0
    %416 = vmatprep.subr.mxu0 0.0
    %417 = vmatpush1.xpose.msra.mxu0 %v386
    %418 = vmatprep.subr.mxu0 0.0
    %419 = vmatpush1.xpose.msra.mxu0 %v384
    %420 = vmatprep.subr.mxu0 0.0
    %421 = vmatpush2.xpose.msra.mxu0 0.0
    %422 = vmatprep.subr.mxu0 0.0
    %423 = vmatpush2.xpose.msra.mxu0 0.0
    %424 = vmatprep.subr.mxu0 0.0
    %425 = vmatpush2.xpose.msra.mxu0 0.0
    %426 = vmatprep.subr.mxu0 0.0
    %427 = vmatpush2.xpose.msra.mxu0 0.0
    %428 = vmatprep.subr.mxu0 0.0
    %429 = vmatpush2.xpose.msra.mxu0 0.0
    %430 = vmatprep.subr.mxu0 0.0
    %431 = vmatpush2.xpose.msra.mxu0 0.0
    %432 = vmatprep.subr.mxu0 0.0
    %433 = vmatpush2.xpose.msra.mxu0 0.0
    %434 = vmatprep.subr.mxu0 0.0
    %435 = vmatpush2.xpose.msra.mxu0 0.0
    %436 = vmatprep.subr.mxu0 0.0
    %437 = vmatpush2.xpose.msra.mxu0 0.0
    %438 = vmatprep.subr.mxu0 0.0
    %439 = vmatpush2.xpose.msra.mxu0 0.0
    %440 = vmatprep.subr.mxu0 0.0
    %441 = vmatpush2.xpose.msra.mxu0 0.0
    %442 = vmatprep.subr.mxu0 0.0
    %443 = vmatpush2.xpose.msra.mxu0 0.0
    %444 = vmatprep.subr.mxu0 0.0
    %445 = vmatpush2.xpose.msra.mxu0 0.0
    %446 = vmatprep.subr.mxu0 0.0
    %447 = vmatpush2.xpose.msra.mxu0 0.0
    %448 = vmatprep.subr.mxu0 0.0
    %449 = vmatpush2.xpose.msra.mxu0 0.0
    %450 = vmatprep.subr.mxu0 0.0
    %451 = vmatpush2.xpose.msra.mxu0 0.0
    %452 = vmatprep.mubr.f32.mxu0 0.0
    %453 = vmatmul.mubr.f32.gmra.mxu0 %v380
    %v454 = vpop.f32.mrf.mxu0
    %v455 = vadd.f32 %v177, %v454
    %v456 = vpop.f32.mrf.mxu0
    %457 = vmatprep.mubr.f32.mxu0 0.0
    %458 = vmatmul.mubr.f32.gmra.mxu0 %v382
    %v459 = vpop.f32.mrf.mxu0
    %v460 = vadd.f32 %v178, %v459
    %v461 = vpop.f32.mrf.mxu0
    %462 = vdwg.mxu0
    %v463 = vmul.f32 %v455, 1.442695
    %v464 = vpow.pop %v463
    %v465 = vmul.f32 %v460, 1.442695
    %v466 = vpow.pop %v465
    %v467 = vsel %vm273, %v464, 0.0
    %468 = vadd.xlane.f32.xlu0 %v467
    %v469 = vpop.xlane.xlu0 %468
    %v470 = vsel %vm273, %v466, 0.0
    %471 = vadd.xlane.f32.xlu0 %v470
    %v472 = vpop.xlane.xlu0 %471
    %v473 = vrcp.pop %v469
    %v474 = vmul.f32 %v464, %v473
    %v475 = vrcp.pop %v472
    %v476 = vmul.f32 %v466, %v475
    %477 = vrot.lane.b32.xlu0 %v169, 56
    %v478 = vpop.permute.xlu0 %477
    %479 = vrot.lane.b32.xlu0 %v174, 56
    %v480 = vpop.permute.xlu0 %479
    %v484 = vsel %vm273, %v474, 0
    %v487 = vsel %vm273, %v476, 0
    %489 = vmatprep.subr.mxu0 0.0
    %490 = vmatpush1.msra.mxu0 0.0
    %491 = vmatprep.subr.mxu0 0.0
    %492 = vmatpush1.msra.mxu0 0.0
    %493 = vmatprep.subr.mxu0 0.0
    %494 = vmatpush1.msra.mxu0 0.0
    %495 = vmatprep.subr.mxu0 0.0
    %496 = vmatpush1.msra.mxu0 0.0
    %497 = vmatprep.subr.mxu0 0.0
    %498 = vmatpush1.msra.mxu0 0.0
    %499 = vmatprep.subr.mxu0 0.0
    %500 = vmatpush1.msra.mxu0 0.0
    %501 = vmatprep.subr.mxu0 0.0
    %502 = vmatpush1.msra.mxu0 0.0
    %503 = vmatprep.subr.mxu0 0.0
    %504 = vmatpush1.msra.mxu0 0.0
    %505 = vmatprep.subr.mxu0 0.0
    %506 = vmatpush1.msra.mxu0 0.0
    %507 = vmatprep.subr.mxu0 0.0
    %508 = vmatpush1.msra.mxu0 0.0
    %509 = vmatprep.subr.mxu0 0.0
    %510 = vmatpush1.msra.mxu0 0.0
    %511 = vmatprep.subr.mxu0 0.0
    %512 = vmatpush1.msra.mxu0 0.0
    %513 = vmatprep.subr.mxu0 0.0
    %514 = vmatpush1.msra.mxu0 0.0
    %515 = vmatprep.subr.mxu0 0.0
    %516 = vmatpush1.msra.mxu0 0.0
    %517 = vmatprep.subr.mxu0 0.0
    %518 = vmatpush1.msra.mxu0 %v480
    %519 = vmatprep.subr.mxu0 0.0
    %520 = vmatpush1.msra.mxu0 %v478
    %521 = vmatprep.subr.mxu0 0.0
    %522 = vmatpush2.msra.mxu0 0.0
    %523 = vmatprep.subr.mxu0 0.0
    %524 = vmatpush2.msra.mxu0 0.0
    %525 = vmatprep.subr.mxu0 0.0
    %526 = vmatpush2.msra.mxu0 0.0
    %527 = vmatprep.subr.mxu0 0.0
    %528 = vmatpush2.msra.mxu0 0.0
    %529 = vmatprep.subr.mxu0 0.0
    %530 = vmatpush2.msra.mxu0 0.0
    %531 = vmatprep.subr.mxu0 0.0
    %532 = vmatpush2.msra.mxu0 0.0
    %533 = vmatprep.subr.mxu0 0.0
    %534 = vmatpush2.msra.mxu0 0.0
    %535 = vmatprep.subr.mxu0 0.0
    %536 = vmatpush2.msra.mxu0 0.0
    %537 = vmatprep.subr.mxu0 0.0
    %538 = vmatpush2.msra.mxu0 0.0
    %539 = vmatprep.subr.mxu0 0.0
    %540 = vmatpush2.msra.mxu0 0.0
    %541 = vmatprep.subr.mxu0 0.0
    %542 = vmatpush2.msra.mxu0 0.0
    %543 = vmatprep.subr.mxu0 0.0
    %544 = vmatpush2.msra.mxu0 0.0
    %545 = vmatprep.subr.mxu0 0.0
    %546 = vmatpush2.msra.mxu0 0.0
    %547 = vmatprep.subr.mxu0 0.0
    %548 = vmatpush2.msra.mxu0 0.0
    %549 = vmatprep.subr.mxu0 0.0
    %550 = vmatpush2.msra.mxu0 0.0
    %551 = vmatprep.subr.mxu0 0.0
    %552 = vmatpush2.msra.mxu0 0.0
    %553 = vmatprep.mubr.f32.mxu0 0.0
    %554 = vmatmul.mubr.f32.gmra.mxu0 %v484
    %v555 = vpop.f32.mrf.mxu0
    %v556 = vadd.f32 0.0, %v555
    %v557 = vpop.f32.mrf.mxu0
    %558 = vmatprep.mubr.f32.mxu0 0.0
    %559 = vmatmul.mubr.f32.gmra.mxu0 %v487
    %v560 = vpop.f32.mrf.mxu0
    %v561 = vadd.f32 0.0, %v560
    %v562 = vpop.f32.mrf.mxu0
    %563 = vdwg.mxu0
    %v564 = vld [vmem:[#allocation4 + $0x48] sm:$0xff]
    %v566 = vsel %vm185, %v556, 0
    %v569 = vsel %vm185, %v561, 0
    %571 = vmatprep.subr.mxu0 0.0
    %572 = vmatpush1.msra.mxu0 0.0
    %573 = vmatprep.subr.mxu0 0.0
    %574 = vmatpush1.msra.mxu0 0.0
    %575 = vmatprep.subr.mxu0 0.0
    %576 = vmatpush1.msra.mxu0 0.0
    %577 = vmatprep.subr.mxu0 0.0
    %578 = vmatpush1.msra.mxu0 0.0
    %579 = vmatprep.subr.mxu0 0.0
    %580 = vmatpush1.msra.mxu0 0.0
    %581 = vmatprep.subr.mxu0 0.0
    %582 = vmatpush1.msra.mxu0 0.0
    %583 = vmatprep.subr.mxu0 0.0
    %584 = vmatpush1.msra.mxu0 0.0
    %585 = vmatprep.subr.mxu0 0.0
    %586 = vmatpush1.msra.mxu0 0.0
    %587 = vmatprep.subr.mxu0 0.0
    %588 = vmatpush1.msra.mxu0 0.0
    %589 = vmatprep.subr.mxu0 0.0
    %590 = vmatpush1.msra.mxu0 0.0
    %591 = vmatprep.subr.mxu0 0.0
    %592 = vmatpush1.msra.mxu0 0.0
    %593 = vmatprep.subr.mxu0 0.0
    %594 = vmatpush1.msra.mxu0 0.0
    %595 = vmatprep.subr.mxu0 0.0
    %596 = vmatpush1.msra.mxu0 0.0
    %597 = vmatprep.subr.mxu0 0.0
    %598 = vmatpush1.msra.mxu0 0.0
    %599 = vmatprep.subr.mxu0 0.0
    %600 = vmatpush1.msra.mxu0 0.0
    %601 = vmatprep.subr.mxu0 0.0
    %602 = vmatpush1.msra.mxu0 %v564
    %603 = vmatprep.subr.mxu0 0.0
    %604 = vmatpush2.msra.mxu0 0.0
    %605 = vmatprep.subr.mxu0 0.0
    %606 = vmatpush2.msra.mxu0 0.0
    %607 = vmatprep.subr.mxu0 0.0
    %608 = vmatpush2.msra.mxu0 0.0
    %609 = vmatprep.subr.mxu0 0.0
    %610 = vmatpush2.msra.mxu0 0.0
    %611 = vmatprep.subr.mxu0 0.0
    %612 = vmatpush2.msra.mxu0 0.0
    %613 = vmatprep.subr.mxu0 0.0
    %614 = vmatpush2.msra.mxu0 0.0
    %615 = vmatprep.subr.mxu0 0.0
    %616 = vmatpush2.msra.mxu0 0.0
    %617 = vmatprep.subr.mxu0 0.0
    %618 = vmatpush2.msra.mxu0 0.0
    %619 = vmatprep.subr.mxu0 0.0
    %620 = vmatpush2.msra.mxu0 0.0
    %621 = vmatprep.subr.mxu0 0.0
    %622 = vmatpush2.msra.mxu0 0.0
    %623 = vmatprep.subr.mxu0 0.0
    %624 = vmatpush2.msra.mxu0 0.0
    %625 = vmatprep.subr.mxu0 0.0
    %626 = vmatpush2.msra.mxu0 0.0
    %627 = vmatprep.subr.mxu0 0.0
    %628 = vmatpush2.msra.mxu0 0.0
    %629 = vmatprep.subr.mxu0 0.0
    %630 = vmatpush2.msra.mxu0 0.0
    %631 = vmatprep.subr.mxu0 0.0
    %632 = vmatpush2.msra.mxu0 0.0
    %633 = vmatprep.subr.mxu0 0.0
    %634 = vmatpush2.msra.mxu0 0.0
    %635 = vmatprep.mubr.f32.mxu0 0.0
    %636 = vmatmul.mubr.f32.gmra.mxu0 %v566
    %v637 = vpop.f32.mrf.mxu0
    %v638 = vadd.f32 0.0, %v637
    %v639 = vpop.f32.mrf.mxu0
    %640 = vmatprep.mubr.f32.mxu0 0.0
    %641 = vmatmul.mubr.f32.gmra.mxu0 %v569
    %v642 = vpop.f32.mrf.mxu0
    %v643 = vadd.f32 0.0, %v642
    %v644 = vpop.f32.mrf.mxu0
    %645 = vdwg.mxu0
    %v647 = vsel %vm185, %v363, 0
    %v650 = vsel %vm185, %v368, 0
    %652 = vmatprep.subr.mxu0 0.0
    %653 = vmatpush1.msra.mxu0 0.0
    %654 = vmatprep.subr.mxu0 0.0
    %655 = vmatpush1.msra.mxu0 0.0
    %656 = vmatprep.subr.mxu0 0.0
    %657 = vmatpush1.msra.mxu0 0.0
    %658 = vmatprep.subr.mxu0 0.0
    %659 = vmatpush1.msra.mxu0 0.0
    %660 = vmatprep.subr.mxu0 0.0
    %661 = vmatpush1.msra.mxu0 0.0
    %662 = vmatprep.subr.mxu0 0.0
    %663 = vmatpush1.msra.mxu0 0.0
    %664 = vmatprep.subr.mxu0 0.0
    %665 = vmatpush1.msra.mxu0 0.0
    %666 = vmatprep.subr.mxu0 0.0
    %667 = vmatpush1.msra.mxu0 0.0
    %668 = vmatprep.subr.mxu0 0.0
    %669 = vmatpush1.msra.mxu0 0.0
    %670 = vmatprep.subr.mxu0 0.0
    %671 = vmatpush1.msra.mxu0 0.0
    %672 = vmatprep.subr.mxu0 0.0
    %673 = vmatpush1.msra.mxu0 0.0
    %674 = vmatprep.subr.mxu0 0.0
    %675 = vmatpush1.msra.mxu0 0.0
    %676 = vmatprep.subr.mxu0 0.0
    %677 = vmatpush1.msra.mxu0 0.0
    %678 = vmatprep.subr.mxu0 0.0
    %679 = vmatpush1.msra.mxu0 0.0
    %680 = vmatprep.subr.mxu0 0.0
    %681 = vmatpush1.msra.mxu0 0.0
    %682 = vmatprep.subr.mxu0 0.0
    %683 = vmatpush1.msra.mxu0 %v371
    %684 = vmatprep.subr.mxu0 0.0
    %685 = vmatpush2.msra.mxu0 0.0
    %686 = vmatprep.subr.mxu0 0.0
    %687 = vmatpush2.msra.mxu0 0.0
    %688 = vmatprep.subr.mxu0 0.0
    %689 = vmatpush2.msra.mxu0 0.0
    %690 = vmatprep.subr.mxu0 0.0
    %691 = vmatpush2.msra.mxu0 0.0
    %692 = vmatprep.subr.mxu0 0.0
    %693 = vmatpush2.msra.mxu0 0.0
    %694 = vmatprep.subr.mxu0 0.0
    %695 = vmatpush2.msra.mxu0 0.0
    %696 = vmatprep.subr.mxu0 0.0
    %697 = vmatpush2.msra.mxu0 0.0
    %698 = vmatprep.subr.mxu0 0.0
    %699 = vmatpush2.msra.mxu0 0.0
    %700 = vmatprep.subr.mxu0 0.0
    %701 = vmatpush2.msra.mxu0 0.0
    %702 = vmatprep.subr.mxu0 0.0
    %703 = vmatpush2.msra.mxu0 0.0
    %704 = vmatprep.subr.mxu0 0.0
    %705 = vmatpush2.msra.mxu0 0.0
    %706 = vmatprep.subr.mxu0 0.0
    %707 = vmatpush2.msra.mxu0 0.0
    %708 = vmatprep.subr.mxu0 0.0
    %709 = vmatpush2.msra.mxu0 0.0
    %710 = vmatprep.subr.mxu0 0.0
    %711 = vmatpush2.msra.mxu0 0.0
    %712 = vmatprep.subr.mxu0 0.0
    %713 = vmatpush2.msra.mxu0 0.0
    %714 = vmatprep.subr.mxu0 0.0
    %715 = vmatpush2.msra.mxu0 0.0
    %716 = vmatprep.mubr.f32.mxu0 0.0
    %717 = vmatmul.mubr.f32.gmra.mxu0 %v647
    %v718 = vpop.f32.mrf.mxu0
    %v719 = vadd.f32 %v638, %v718
    %v720 = vpop.f32.mrf.mxu0
    %721 = vmatprep.mubr.f32.mxu0 0.0
    %722 = vmatmul.mubr.f32.gmra.mxu0 %v650
    %v723 = vpop.f32.mrf.mxu0
    %v724 = vadd.f32 %v643, %v723
    %v725 = vpop.f32.mrf.mxu0
    %726 = vdwg.mxu0
    %727 = vrot.lane.b32.xlu0 %v169, 112
    %v728 = vpop.permute.xlu0 %727
    %729 = vrot.lane.b32.xlu0 %v174, 112
    %v730 = vpop.permute.xlu0 %729
    %731 = vrot.lane.b32.xlu0 %v169, 80
    %v732 = vpop.permute.xlu0 %731
    %733 = vrot.lane.b32.xlu0 %v174, 80
    %v734 = vpop.permute.xlu0 %733
    %v735 = vsel %vm185, %v728, 0
    %v737 = vsel %vm185, %v730, 0
    %v739 = vsel %vm185, %v732, 0
    %v741 = vsel %vm185, %v734, 0
    %743 = vmatprep.subr.mxu0 0.0
    %744 = vmatpush1.xpose.msra.mxu0 0.0
    %745 = vmatprep.subr.mxu0 0.0
    %746 = vmatpush1.xpose.msra.mxu0 0.0
    %747 = vmatprep.subr.mxu0 0.0
    %748 = vmatpush1.xpose.msra.mxu0 0.0
    %749 = vmatprep.subr.mxu0 0.0
    %750 = vmatpush1.xpose.msra.mxu0 0.0
    %751 = vmatprep.subr.mxu0 0.0
    %752 = vmatpush1.xpose.msra.mxu0 0.0
    %753 = vmatprep.subr.mxu0 0.0
    %754 = vmatpush1.xpose.msra.mxu0 0.0
    %755 = vmatprep.subr.mxu0 0.0
    %756 = vmatpush1.xpose.msra.mxu0 0.0
    %757 = vmatprep.subr.mxu0 0.0
    %758 = vmatpush1.xpose.msra.mxu0 0.0
    %759 = vmatprep.subr.mxu0 0.0
    %760 = vmatpush1.xpose.msra.mxu0 0.0
    %761 = vmatprep.subr.mxu0 0.0
    %762 = vmatpush1.xpose.msra.mxu0 0.0
    %763 = vmatprep.subr.mxu0 0.0
    %764 = vmatpush1.xpose.msra.mxu0 0.0
    %765 = vmatprep.subr.mxu0 0.0
    %766 = vmatpush1.xpose.msra.mxu0 0.0
    %767 = vmatprep.subr.mxu0 0.0
    %768 = vmatpush1.xpose.msra.mxu0 0.0
    %769 = vmatprep.subr.mxu0 0.0
    %770 = vmatpush1.xpose.msra.mxu0 0.0
    %771 = vmatprep.subr.mxu0 0.0
    %772 = vmatpush1.xpose.msra.mxu0 %v741
    %773 = vmatprep.subr.mxu0 0.0
    %774 = vmatpush1.xpose.msra.mxu0 %v739
    %775 = vmatprep.subr.mxu0 0.0
    %776 = vmatpush2.xpose.msra.mxu0 0.0
    %777 = vmatprep.subr.mxu0 0.0
    %778 = vmatpush2.xpose.msra.mxu0 0.0
    %779 = vmatprep.subr.mxu0 0.0
    %780 = vmatpush2.xpose.msra.mxu0 0.0
    %781 = vmatprep.subr.mxu0 0.0
    %782 = vmatpush2.xpose.msra.mxu0 0.0
    %783 = vmatprep.subr.mxu0 0.0
    %784 = vmatpush2.xpose.msra.mxu0 0.0
    %785 = vmatprep.subr.mxu0 0.0
    %786 = vmatpush2.xpose.msra.mxu0 0.0
    %787 = vmatprep.subr.mxu0 0.0
    %788 = vmatpush2.xpose.msra.mxu0 0.0
    %789 = vmatprep.subr.mxu0 0.0
    %790 = vmatpush2.xpose.msra.mxu0 0.0
    %791 = vmatprep.subr.mxu0 0.0
    %792 = vmatpush2.xpose.msra.mxu0 0.0
    %793 = vmatprep.subr.mxu0 0.0
    %794 = vmatpush2.xpose.msra.mxu0 0.0
    %795 = vmatprep.subr.mxu0 0.0
    %796 = vmatpush2.xpose.msra.mxu0 0.0
    %797 = vmatprep.subr.mxu0 0.0
    %798 = vmatpush2.xpose.msra.mxu0 0.0
    %799 = vmatprep.subr.mxu0 0.0
    %800 = vmatpush2.xpose.msra.mxu0 0.0
    %801 = vmatprep.subr.mxu0 0.0
    %802 = vmatpush2.xpose.msra.mxu0 0.0
    %803 = vmatprep.subr.mxu0 0.0
    %804 = vmatpush2.xpose.msra.mxu0 0.0
    %805 = vmatprep.subr.mxu0 0.0
    %806 = vmatpush2.xpose.msra.mxu0 0.0
    %807 = vmatprep.mubr.f32.mxu0 0.0
    %808 = vmatmul.mubr.f32.gmra.mxu0 %v735
    %v809 = vpop.f32.mrf.mxu0
    %v810 = vadd.f32 %v177, %v809
    %v811 = vpop.f32.mrf.mxu0
    %812 = vmatprep.mubr.f32.mxu0 0.0
    %813 = vmatmul.mubr.f32.gmra.mxu0 %v737
    %v814 = vpop.f32.mrf.mxu0
    %v815 = vadd.f32 %v178, %v814
    %v816 = vpop.f32.mrf.mxu0
    %817 = vdwg.mxu0
    %v818 = vmul.f32 %v810, 1.442695
    %v819 = vpow.pop %v818
    %v820 = vmul.f32 %v815, 1.442695
    %v821 = vpow.pop %v820
    %v822 = vsel %vm273, %v819, 0.0
    %823 = vadd.xlane.f32.xlu0 %v822
    %v824 = vpop.xlane.xlu0 %823
    %v825 = vsel %vm273, %v821, 0.0
    %826 = vadd.xlane.f32.xlu0 %v825
    %v827 = vpop.xlane.xlu0 %826
    %v828 = vrcp.pop %v824
    %v829 = vmul.f32 %v819, %v828
    %v830 = vrcp.pop %v827
    %v831 = vmul.f32 %v821, %v830
    %832 = vrot.lane.b32.xlu0 %v169, 48
    %v833 = vpop.permute.xlu0 %832
    %834 = vrot.lane.b32.xlu0 %v174, 48
    %v835 = vpop.permute.xlu0 %834
    %v839 = vsel %vm273, %v829, 0
    %v842 = vsel %vm273, %v831, 0
    %844 = vmatprep.subr.mxu0 0.0
    %845 = vmatpush1.msra.mxu0 0.0
    %846 = vmatprep.subr.mxu0 0.0
    %847 = vmatpush1.msra.mxu0 0.0
    %848 = vmatprep.subr.mxu0 0.0
    %849 = vmatpush1.msra.mxu0 0.0
    %850 = vmatprep.subr.mxu0 0.0
    %851 = vmatpush1.msra.mxu0 0.0
    %852 = vmatprep.subr.mxu0 0.0
    %853 = vmatpush1.msra.mxu0 0.0
    %854 = vmatprep.subr.mxu0 0.0
    %855 = vmatpush1.msra.mxu0 0.0
    %856 = vmatprep.subr.mxu0 0.0
    %857 = vmatpush1.msra.mxu0 0.0
    %858 = vmatprep.subr.mxu0 0.0
    %859 = vmatpush1.msra.mxu0 0.0
    %860 = vmatprep.subr.mxu0 0.0
    %861 = vmatpush1.msra.mxu0 0.0
    %862 = vmatprep.subr.mxu0 0.0
    %863 = vmatpush1.msra.mxu0 0.0
    %864 = vmatprep.subr.mxu0 0.0
    %865 = vmatpush1.msra.mxu0 0.0
    %866 = vmatprep.subr.mxu0 0.0
    %867 = vmatpush1.msra.mxu0 0.0
    %868 = vmatprep.subr.mxu0 0.0
    %869 = vmatpush1.msra.mxu0 0.0
    %870 = vmatprep.subr.mxu0 0.0
    %871 = vmatpush1.msra.mxu0 0.0
    %872 = vmatprep.subr.mxu0 0.0
    %873 = vmatpush1.msra.mxu0 %v835
    %874 = vmatprep.subr.mxu0 0.0
    %875 = vmatpush1.msra.mxu0 %v833
    %876 = vmatprep.subr.mxu0 0.0
    %877 = vmatpush2.msra.mxu0 0.0
    %878 = vmatprep.subr.mxu0 0.0
    %879 = vmatpush2.msra.mxu0 0.0
    %880 = vmatprep.subr.mxu0 0.0
    %881 = vmatpush2.msra.mxu0 0.0
    %882 = vmatprep.subr.mxu0 0.0
    %883 = vmatpush2.msra.mxu0 0.0
    %884 = vmatprep.subr.mxu0 0.0
    %885 = vmatpush2.msra.mxu0 0.0
    %886 = vmatprep.subr.mxu0 0.0
    %887 = vmatpush2.msra.mxu0 0.0
    %888 = vmatprep.subr.mxu0 0.0
    %889 = vmatpush2.msra.mxu0 0.0
    %890 = vmatprep.subr.mxu0 0.0
    %891 = vmatpush2.msra.mxu0 0.0
    %892 = vmatprep.subr.mxu0 0.0
    %893 = vmatpush2.msra.mxu0 0.0
    %894 = vmatprep.subr.mxu0 0.0
    %895 = vmatpush2.msra.mxu0 0.0
    %896 = vmatprep.subr.mxu0 0.0
    %897 = vmatpush2.msra.mxu0 0.0
    %898 = vmatprep.subr.mxu0 0.0
    %899 = vmatpush2.msra.mxu0 0.0
    %900 = vmatprep.subr.mxu0 0.0
    %901 = vmatpush2.msra.mxu0 0.0
    %902 = vmatprep.subr.mxu0 0.0
    %903 = vmatpush2.msra.mxu0 0.0
    %904 = vmatprep.subr.mxu0 0.0
    %905 = vmatpush2.msra.mxu0 0.0
    %906 = vmatprep.subr.mxu0 0.0
    %907 = vmatpush2.msra.mxu0 0.0
    %908 = vmatprep.mubr.f32.mxu0 0.0
    %909 = vmatmul.mubr.f32.gmra.mxu0 %v839
    %v910 = vpop.f32.mrf.mxu0
    %v911 = vadd.f32 0.0, %v910
    %v912 = vpop.f32.mrf.mxu0
    %913 = vmatprep.mubr.f32.mxu0 0.0
    %914 = vmatmul.mubr.f32.gmra.mxu0 %v842
    %v915 = vpop.f32.mrf.mxu0
    %v916 = vadd.f32 0.0, %v915
    %v917 = vpop.f32.mrf.mxu0
    %918 = vdwg.mxu0
    %v919 = vld [vmem:[#allocation4 + $0x50] sm:$0xff]
    %v921 = vsel %vm185, %v911, 0
    %v924 = vsel %vm185, %v916, 0
    %926 = vmatprep.subr.mxu0 0.0
    %927 = vmatpush1.msra.mxu0 0.0
    %928 = vmatprep.subr.mxu0 0.0
    %929 = vmatpush1.msra.mxu0 0.0
    %930 = vmatprep.subr.mxu0 0.0
    %931 = vmatpush1.msra.mxu0 0.0
    %932 = vmatprep.subr.mxu0 0.0
    %933 = vmatpush1.msra.mxu0 0.0
    %934 = vmatprep.subr.mxu0 0.0
    %935 = vmatpush1.msra.mxu0 0.0
    %936 = vmatprep.subr.mxu0 0.0
    %937 = vmatpush1.msra.mxu0 0.0
    %938 = vmatprep.subr.mxu0 0.0
    %939 = vmatpush1.msra.mxu0 0.0
    %940 = vmatprep.subr.mxu0 0.0
    %941 = vmatpush1.msra.mxu0 0.0
    %942 = vmatprep.subr.mxu0 0.0
    %943 = vmatpush1.msra.mxu0 0.0
    %944 = vmatprep.subr.mxu0 0.0
    %945 = vmatpush1.msra.mxu0 0.0
    %946 = vmatprep.subr.mxu0 0.0
    %947 = vmatpush1.msra.mxu0 0.0
    %948 = vmatprep.subr.mxu0 0.0
    %949 = vmatpush1.msra.mxu0 0.0
    %950 = vmatprep.subr.mxu0 0.0
    %951 = vmatpush1.msra.mxu0 0.0
    %952 = vmatprep.subr.mxu0 0.0
    %953 = vmatpush1.msra.mxu0 0.0
    %954 = vmatprep.subr.mxu0 0.0
    %955 = vmatpush1.msra.mxu0 0.0
    %956 = vmatprep.subr.mxu0 0.0
    %957 = vmatpush1.msra.mxu0 %v919
    %958 = vmatprep.subr.mxu0 0.0
    %959 = vmatpush2.msra.mxu0 0.0
    %960 = vmatprep.subr.mxu0 0.0
    %961 = vmatpush2.msra.mxu0 0.0
    %962 = vmatprep.subr.mxu0 0.0
    %963 = vmatpush2.msra.mxu0 0.0
    %964 = vmatprep.subr.mxu0 0.0
    %965 = vmatpush2.msra.mxu0 0.0
    %966 = vmatprep.subr.mxu0 0.0
    %967 = vmatpush2.msra.mxu0 0.0
    %968 = vmatprep.subr.mxu0 0.0
    %969 = vmatpush2.msra.mxu0 0.0
    %970 = vmatprep.subr.mxu0 0.0
    %971 = vmatpush2.msra.mxu0 0.0
    %972 = vmatprep.subr.mxu0 0.0
    %973 = vmatpush2.msra.mxu0 0.0
    %974 = vmatprep.subr.mxu0 0.0
    %975 = vmatpush2.msra.mxu0 0.0
    %976 = vmatprep.subr.mxu0 0.0
    %977 = vmatpush2.msra.mxu0 0.0
    %978 = vmatprep.subr.mxu0 0.0
    %979 = vmatpush2.msra.mxu0 0.0
    %980 = vmatprep.subr.mxu0 0.0
    %981 = vmatpush2.msra.mxu0 0.0
    %982 = vmatprep.subr.mxu0 0.0
    %983 = vmatpush2.msra.mxu0 0.0
    %984 = vmatprep.subr.mxu0 0.0
    %985 = vmatpush2.msra.mxu0 0.0
    %986 = vmatprep.subr.mxu0 0.0
    %987 = vmatpush2.msra.mxu0 0.0
    %988 = vmatprep.subr.mxu0 0.0
    %989 = vmatpush2.msra.mxu0 0.0
    %990 = vmatprep.mubr.f32.mxu0 0.0
    %991 = vmatmul.mubr.f32.gmra.mxu0 %v921
    %v992 = vpop.f32.mrf.mxu0
    %v993 = vadd.f32 0.0, %v992
    %v994 = vpop.f32.mrf.mxu0
    %995 = vmatprep.mubr.f32.mxu0 0.0
    %996 = vmatmul.mubr.f32.gmra.mxu0 %v924
    %v997 = vpop.f32.mrf.mxu0
    %v998 = vadd.f32 0.0, %v997
    %v999 = vpop.f32.mrf.mxu0
    %1000 = vdwg.mxu0
    %v1001 = vadd.f32 %v719, %v993
    %v1002 = vadd.f32 %v724, %v998
    %1003 = vrot.lane.b32.xlu0 %v169, 104
    %v1004 = vpop.permute.xlu0 %1003
    %1005 = vrot.lane.b32.xlu0 %v174, 104
    %v1006 = vpop.permute.xlu0 %1005
    %1007 = vrot.lane.b32.xlu0 %v169, 72
    %v1008 = vpop.permute.xlu0 %1007
    %1009 = vrot.lane.b32.xlu0 %v174, 72
    %v1010 = vpop.permute.xlu0 %1009
    %v1011 = vsel %vm185, %v1004, 0
    %v1013 = vsel %vm185, %v1006, 0
    %v1015 = vsel %vm185, %v1008, 0
    %v1017 = vsel %vm185, %v1010, 0
    %1019 = vmatprep.subr.mxu0 0.0
    %1020 = vmatpush1.xpose.msra.mxu0 0.0
    %1021 = vmatprep.subr.mxu0 0.0
    %1022 = vmatpush1.xpose.msra.mxu0 0.0
    %1023 = vmatprep.subr.mxu0 0.0
    %1024 = vmatpush1.xpose.msra.mxu0 0.0
    %1025 = vmatprep.subr.mxu0 0.0
    %1026 = vmatpush1.xpose.msra.mxu0 0.0
    %1027 = vmatprep.subr.mxu0 0.0
    %1028 = vmatpush1.xpose.msra.mxu0 0.0
    %1029 = vmatprep.subr.mxu0 0.0
    %1030 = vmatpush1.xpose.msra.mxu0 0.0
    %1031 = vmatprep.subr.mxu0 0.0
    %1032 = vmatpush1.xpose.msra.mxu0 0.0
    %1033 = vmatprep.subr.mxu0 0.0
    %1034 = vmatpush1.xpose.msra.mxu0 0.0
    %1035 = vmatprep.subr.mxu0 0.0
    %1036 = vmatpush1.xpose.msra.mxu0 0.0
    %1037 = vmatprep.subr.mxu0 0.0
    %1038 = vmatpush1.xpose.msra.mxu0 0.0
    %1039 = vmatprep.subr.mxu0 0.0
    %1040 = vmatpush1.xpose.msra.mxu0 0.0
    %1041 = vmatprep.subr.mxu0 0.0
    %1042 = vmatpush1.xpose.msra.mxu0 0.0
    %1043 = vmatprep.subr.mxu0 0.0
    %1044 = vmatpush1.xpose.msra.mxu0 0.0
    %1045 = vmatprep.subr.mxu0 0.0
    %1046 = vmatpush1.xpose.msra.mxu0 0.0
    %1047 = vmatprep.subr.mxu0 0.0
    %1048 = vmatpush1.xpose.msra.mxu0 %v1017
    %1049 = vmatprep.subr.mxu0 0.0
    %1050 = vmatpush1.xpose.msra.mxu0 %v1015
    %1051 = vmatprep.subr.mxu0 0.0
    %1052 = vmatpush2.xpose.msra.mxu0 0.0
    %1053 = vmatprep.subr.mxu0 0.0
    %1054 = vmatpush2.xpose.msra.mxu0 0.0
    %1055 = vmatprep.subr.mxu0 0.0
    %1056 = vmatpush2.xpose.msra.mxu0 0.0
    %1057 = vmatprep.subr.mxu0 0.0
    %1058 = vmatpush2.xpose.msra.mxu0 0.0
    %1059 = vmatprep.subr.mxu0 0.0
    %1060 = vmatpush2.xpose.msra.mxu0 0.0
    %1061 = vmatprep.subr.mxu0 0.0
    %1062 = vmatpush2.xpose.msra.mxu0 0.0
    %1063 = vmatprep.subr.mxu0 0.0
    %1064 = vmatpush2.xpose.msra.mxu0 0.0
    %1065 = vmatprep.subr.mxu0 0.0
    %1066 = vmatpush2.xpose.msra.mxu0 0.0
    %1067 = vmatprep.subr.mxu0 0.0
    %1068 = vmatpush2.xpose.msra.mxu0 0.0
    %1069 = vmatprep.subr.mxu0 0.0
    %1070 = vmatpush2.xpose.msra.mxu0 0.0
    %1071 = vmatprep.subr.mxu0 0.0
    %1072 = vmatpush2.xpose.msra.mxu0 0.0
    %1073 = vmatprep.subr.mxu0 0.0
    %1074 = vmatpush2.xpose.msra.mxu0 0.0
    %1075 = vmatprep.subr.mxu0 0.0
    %1076 = vmatpush2.xpose.msra.mxu0 0.0
    %1077 = vmatprep.subr.mxu0 0.0
    %1078 = vmatpush2.xpose.msra.mxu0 0.0
    %1079 = vmatprep.subr.mxu0 0.0
    %1080 = vmatpush2.xpose.msra.mxu0 0.0
    %1081 = vmatprep.subr.mxu0 0.0
    %1082 = vmatpush2.xpose.msra.mxu0 0.0
    %1083 = vmatprep.mubr.f32.mxu0 0.0
    %1084 = vmatmul.mubr.f32.gmra.mxu0 %v1011
    %v1085 = vpop.f32.mrf.mxu0
    %v1086 = vadd.f32 %v177, %v1085
    %v1087 = vpop.f32.mrf.mxu0
    %1088 = vmatprep.mubr.f32.mxu0 0.0
    %1089 = vmatmul.mubr.f32.gmra.mxu0 %v1013
    %v1090 = vpop.f32.mrf.mxu0
    %v1091 = vadd.f32 %v178, %v1090
    %v1092 = vpop.f32.mrf.mxu0
    %1093 = vdwg.mxu0
    %v1094 = vmul.f32 %v1086, 1.442695
    %v1095 = vpow.pop %v1094
    %v1096 = vmul.f32 %v1091, 1.442695
    %v1097 = vpow.pop %v1096
    %v1098 = vsel %vm273, %v1095, 0.0
    %1099 = vadd.xlane.f32.xlu0 %v1098
    %v1100 = vpop.xlane.xlu0 %1099
    %v1101 = vsel %vm273, %v1097, 0.0
    %1102 = vadd.xlane.f32.xlu0 %v1101
    %v1103 = vpop.xlane.xlu0 %1102
    %v1104 = vrcp.pop %v1100
    %v1105 = vmul.f32 %v1095, %v1104
    %v1106 = vrcp.pop %v1103
    %v1107 = vmul.f32 %v1097, %v1106
    %1108 = vrot.lane.b32.xlu0 %v169, 40
    %v1109 = vpop.permute.xlu0 %1108
    %1110 = vrot.lane.b32.xlu0 %v174, 40
    %v1111 = vpop.permute.xlu0 %1110
    %v1115 = vsel %vm273, %v1105, 0
    %v1118 = vsel %vm273, %v1107, 0
    %1120 = vmatprep.subr.mxu0 0.0
    %1121 = vmatpush1.msra.mxu0 0.0
    %1122 = vmatprep.subr.mxu0 0.0
    %1123 = vmatpush1.msra.mxu0 0.0
    %1124 = vmatprep.subr.mxu0 0.0
    %1125 = vmatpush1.msra.mxu0 0.0
    %1126 = vmatprep.subr.mxu0 0.0
    %1127 = vmatpush1.msra.mxu0 0.0
    %1128 = vmatprep.subr.mxu0 0.0
    %1129 = vmatpush1.msra.mxu0 0.0
    %1130 = vmatprep.subr.mxu0 0.0
    %1131 = vmatpush1.msra.mxu0 0.0
    %1132 = vmatprep.subr.mxu0 0.0
    %1133 = vmatpush1.msra.mxu0 0.0
    %1134 = vmatprep.subr.mxu0 0.0
    %1135 = vmatpush1.msra.mxu0 0.0
    %1136 = vmatprep.subr.mxu0 0.0
    %1137 = vmatpush1.msra.mxu0 0.0
    %1138 = vmatprep.subr.mxu0 0.0
    %1139 = vmatpush1.msra.mxu0 0.0
    %1140 = vmatprep.subr.mxu0 0.0
    %1141 = vmatpush1.msra.mxu0 0.0
    %1142 = vmatprep.subr.mxu0 0.0
    %1143 = vmatpush1.msra.mxu0 0.0
    %1144 = vmatprep.subr.mxu0 0.0
    %1145 = vmatpush1.msra.mxu0 0.0
    %1146 = vmatprep.subr.mxu0 0.0
    %1147 = vmatpush1.msra.mxu0 0.0
    %1148 = vmatprep.subr.mxu0 0.0
    %1149 = vmatpush1.msra.mxu0 %v1111
    %1150 = vmatprep.subr.mxu0 0.0
    %1151 = vmatpush1.msra.mxu0 %v1109
    %1152 = vmatprep.subr.mxu0 0.0
    %1153 = vmatpush2.msra.mxu0 0.0
    %1154 = vmatprep.subr.mxu0 0.0
    %1155 = vmatpush2.msra.mxu0 0.0
    %1156 = vmatprep.subr.mxu0 0.0
    %1157 = vmatpush2.msra.mxu0 0.0
    %1158 = vmatprep.subr.mxu0 0.0
    %1159 = vmatpush2.msra.mxu0 0.0
    %1160 = vmatprep.subr.mxu0 0.0
    %1161 = vmatpush2.msra.mxu0 0.0
    %1162 = vmatprep.subr.mxu0 0.0
    %1163 = vmatpush2.msra.mxu0 0.0
    %1164 = vmatprep.subr.mxu0 0.0
    %1165 = vmatpush2.msra.mxu0 0.0
    %1166 = vmatprep.subr.mxu0 0.0
    %1167 = vmatpush2.msra.mxu0 0.0
    %1168 = vmatprep.subr.mxu0 0.0
    %1169 = vmatpush2.msra.mxu0 0.0
    %1170 = vmatprep.subr.mxu0 0.0
    %1171 = vmatpush2.msra.mxu0 0.0
    %1172 = vmatprep.subr.mxu0 0.0
    %1173 = vmatpush2.msra.mxu0 0.0
    %1174 = vmatprep.subr.mxu0 0.0
    %1175 = vmatpush2.msra.mxu0 0.0
    %1176 = vmatprep.subr.mxu0 0.0
    %1177 = vmatpush2.msra.mxu0 0.0
    %1178 = vmatprep.subr.mxu0 0.0
    %1179 = vmatpush2.msra.mxu0 0.0
    %1180 = vmatprep.subr.mxu0 0.0
    %1181 = vmatpush2.msra.mxu0 0.0
    %1182 = vmatprep.subr.mxu0 0.0
    %1183 = vmatpush2.msra.mxu0 0.0
    %1184 = vmatprep.mubr.f32.mxu0 0.0
    %1185 = vmatmul.mubr.f32.gmra.mxu0 %v1115
    %v1186 = vpop.f32.mrf.mxu0
    %v1187 = vadd.f32 0.0, %v1186
    %v1188 = vpop.f32.mrf.mxu0
    %1189 = vmatprep.mubr.f32.mxu0 0.0
    %1190 = vmatmul.mubr.f32.gmra.mxu0 %v1118
    %v1191 = vpop.f32.mrf.mxu0
    %v1192 = vadd.f32 0.0, %v1191
    %v1193 = vpop.f32.mrf.mxu0
    %1194 = vdwg.mxu0
    %v1195 = vld [vmem:[#allocation4 + $0x58] sm:$0xff]
    %v1197 = vsel %vm185, %v1187, 0
    %v1200 = vsel %vm185, %v1192, 0
    %1202 = vmatprep.subr.mxu0 0.0
    %1203 = vmatpush1.msra.mxu0 0.0
    %1204 = vmatprep.subr.mxu0 0.0
    %1205 = vmatpush1.msra.mxu0 0.0
    %1206 = vmatprep.subr.mxu0 0.0
    %1207 = vmatpush1.msra.mxu0 0.0
    %1208 = vmatprep.subr.mxu0 0.0
    %1209 = vmatpush1.msra.mxu0 0.0
    %1210 = vmatprep.subr.mxu0 0.0
    %1211 = vmatpush1.msra.mxu0 0.0
    %1212 = vmatprep.subr.mxu0 0.0
    %1213 = vmatpush1.msra.mxu0 0.0
    %1214 = vmatprep.subr.mxu0 0.0
    %1215 = vmatpush1.msra.mxu0 0.0
    %1216 = vmatprep.subr.mxu0 0.0
    %1217 = vmatpush1.msra.mxu0 0.0
    %1218 = vmatprep.subr.mxu0 0.0
    %1219 = vmatpush1.msra.mxu0 0.0
    %1220 = vmatprep.subr.mxu0 0.0
    %1221 = vmatpush1.msra.mxu0 0.0
    %1222 = vmatprep.subr.mxu0 0.0
    %1223 = vmatpush1.msra.mxu0 0.0
    %1224 = vmatprep.subr.mxu0 0.0
    %1225 = vmatpush1.msra.mxu0 0.0
    %1226 = vmatprep.subr.mxu0 0.0
    %1227 = vmatpush1.msra.mxu0 0.0
    %1228 = vmatprep.subr.mxu0 0.0
    %1229 = vmatpush1.msra.mxu0 0.0
    %1230 = vmatprep.subr.mxu0 0.0
    %1231 = vmatpush1.msra.mxu0 0.0
    %1232 = vmatprep.subr.mxu0 0.0
    %1233 = vmatpush1.msra.mxu0 %v1195
    %1234 = vmatprep.subr.mxu0 0.0
    %1235 = vmatpush2.msra.mxu0 0.0
    %1236 = vmatprep.subr.mxu0 0.0
    %1237 = vmatpush2.msra.mxu0 0.0
    %1238 = vmatprep.subr.mxu0 0.0
    %1239 = vmatpush2.msra.mxu0 0.0
    %1240 = vmatprep.subr.mxu0 0.0
    %1241 = vmatpush2.msra.mxu0 0.0
    %1242 = vmatprep.subr.mxu0 0.0
    %1243 = vmatpush2.msra.mxu0 0.0
    %1244 = vmatprep.subr.mxu0 0.0
    %1245 = vmatpush2.msra.mxu0 0.0
    %1246 = vmatprep.subr.mxu0 0.0
    %1247 = vmatpush2.msra.mxu0 0.0
    %1248 = vmatprep.subr.mxu0 0.0
    %1249 = vmatpush2.msra.mxu0 0.0
    %1250 = vmatprep.subr.mxu0 0.0
    %1251 = vmatpush2.msra.mxu0 0.0
    %1252 = vmatprep.subr.mxu0 0.0
    %1253 = vmatpush2.msra.mxu0 0.0
    %1254 = vmatprep.subr.mxu0 0.0
    %1255 = vmatpush2.msra.mxu0 0.0
    %1256 = vmatprep.subr.mxu0 0.0
    %1257 = vmatpush2.msra.mxu0 0.0
    %1258 = vmatprep.subr.mxu0 0.0
    %1259 = vmatpush2.msra.mxu0 0.0
    %1260 = vmatprep.subr.mxu0 0.0
    %1261 = vmatpush2.msra.mxu0 0.0
    %1262 = vmatprep.subr.mxu0 0.0
    %1263 = vmatpush2.msra.mxu0 0.0
    %1264 = vmatprep.subr.mxu0 0.0
    %1265 = vmatpush2.msra.mxu0 0.0
    %1266 = vmatprep.mubr.f32.mxu0 0.0
    %1267 = vmatmul.mubr.f32.gmra.mxu0 %v1197
    %v1268 = vpop.f32.mrf.mxu0
    %v1269 = vadd.f32 0.0, %v1268
    %v1270 = vpop.f32.mrf.mxu0
    %1271 = vmatprep.mubr.f32.mxu0 0.0
    %1272 = vmatmul.mubr.f32.gmra.mxu0 %v1200
    %v1273 = vpop.f32.mrf.mxu0
    %v1274 = vadd.f32 0.0, %v1273
    %v1275 = vpop.f32.mrf.mxu0
    %1276 = vdwg.mxu0
    %v1277 = vadd.f32 %v1001, %v1269
    %v1278 = vadd.f32 %v1002, %v1274
    %v1279 = vadd.f32 %v43, %v1277
    %v1280 = vadd.f32 %v44, %v1278
    %v1281 = vld [vmem:[#allocation4 + $0x17] sm:$0x1]
    %v1282 = vlaneseq
    %v1283 = vshrl.u32 %v1282, 7
    %v1284 = vsub.s32 0, %v1283
    %v1285 = vrot.slane %v1281, %v1284
    %v1286 = vadd.f32 %v1279, %v1285
    %v1287 = vadd.f32 %v1280, %v1285
    %v1288 = vld [vmem:[#allocation4 + $0x12] sm:$0x1]
    %v1289 = vld [vmem:[#allocation4 + $0x13] sm:$0x1]
    %v1290 = vsel %vm47, %v1286, 0.0
    %1291 = vadd.xlane.f32.xlu0 %v1290
    %v1292 = vpop.xlane.xlu0 %1291
    %v1293 = vsel %vm47, %v1287, 0.0
    %1294 = vadd.xlane.f32.xlu0 %v1293
    %v1295 = vpop.xlane.xlu0 %1294
    %v1296 = vmul.f32 %v1292, %v54
    %v1297 = vmul.f32 %v1295, %v54
    %v1298 = vsub.f32 %v1286, %v1296
    %v1299 = vsub.f32 %v1287, %v1297
    %v1300 = vmul.f32 %v1298, %v1298
    %v1301 = vmul.f32 %v1299, %v1299
    %v1302 = vsel %vm47, %v1300, 0.0
    %1303 = vadd.xlane.f32.xlu0 %v1302
    %v1304 = vpop.xlane.xlu0 %1303
    %v1305 = vsel %vm47, %v1301, 0.0
    %1306 = vadd.xlane.f32.xlu0 %v1305
    %v1307 = vpop.xlane.xlu0 %1306
    %v1308 = vmul.f32 %v1304, %v54
    %v1309 = vmul.f32 %v1307, %v54
    %v1310 = vadd.f32 %v1308, 1e-05
    %v1311 = vadd.f32 %v1309, 1e-05
    %v1312 = vrsqrt.pop %v1310
    %v1313 = vrsqrt.pop %v1311
    %v1314 = vmul.f32 %v1298, %v1312
    %v1315 = vmul.f32 %v1299, %v1313
    %v1316 = vlaneseq
    %v1317 = vshrl.u32 %v1316, 7
    %v1318 = vsub.s32 0, %v1317
    %v1319 = vrot.slane %v1288, %v1318
    %v1320 = vmul.f32 %v1314, %v1319
    %v1321 = vmul.f32 %v1315, %v1319
    %v1322 = vlaneseq
    %v1323 = vshrl.u32 %v1322, 7
    %v1324 = vsub.s32 0, %v1323
    %v1325 = vrot.slane %v1289, %v1324
    %v1326 = vadd.f32 %v1320, %v1325
    %v1327 = vadd.f32 %v1321, %v1325
    %v1328 = vld [vmem:[#allocation4 + $0x60] sm:$0xff]
    %v1329 = vld [vmem:[#allocation4 + $0x68] sm:$0xff]
    %v1330 = vld [vmem:[#allocation4 + $0x70] sm:$0xff]
    %v1331 = vld [vmem:[#allocation4 + $0x78] sm:$0xff]
    %v1332 = vld [vmem:[#allocation4 + $0x18] sm:$0x1]
    %v1333 = vlaneseq
    %v1334 = vshrl.u32 %v1333, 7
    %v1335 = vsub.s32 0, %v1334
    %v1336 = vrot.slane %v1332, %v1335
    %v1338 = vsel %vm47, %v1326, 0
    %v1341 = vsel %vm47, %v1327, 0
    %1343 = vmatprep.subr.mxu0 0.0
    %1344 = vmatpush1.msra.mxu0 0.0
    %1345 = vmatprep.subr.mxu0 0.0
    %1346 = vmatpush1.msra.mxu0 0.0
    %1347 = vmatprep.subr.mxu0 0.0
    %1348 = vmatpush1.msra.mxu0 0.0
    %1349 = vmatprep.subr.mxu0 0.0
    %1350 = vmatpush1.msra.mxu0 0.0
    %1351 = vmatprep.subr.mxu0 0.0
    %1352 = vmatpush1.msra.mxu0 0.0
    %1353 = vmatprep.subr.mxu0 0.0
    %1354 = vmatpush1.msra.mxu0 0.0
    %1355 = vmatprep.subr.mxu0 0.0
    %1356 = vmatpush1.msra.mxu0 0.0
    %1357 = vmatprep.subr.mxu0 0.0
    %1358 = vmatpush1.msra.mxu0 0.0
    %1359 = vmatprep.subr.mxu0 0.0
    %1360 = vmatpush1.msra.mxu0 0.0
    %1361 = vmatprep.subr.mxu0 0.0
    %1362 = vmatpush1.msra.mxu0 0.0
    %1363 = vmatprep.subr.mxu0 0.0
    %1364 = vmatpush1.msra.mxu0 0.0
    %1365 = vmatprep.subr.mxu0 0.0
    %1366 = vmatpush1.msra.mxu0 0.0
    %1367 = vmatprep.subr.mxu0 0.0
    %1368 = vmatpush1.msra.mxu0 %v1331
    %1369 = vmatprep.subr.mxu0 0.0
    %1370 = vmatpush1.msra.mxu0 %v1330
    %1371 = vmatprep.subr.mxu0 0.0
    %1372 = vmatpush1.msra.mxu0 %v1329
    %1373 = vmatprep.subr.mxu0 0.0
    %1374 = vmatpush1.msra.mxu0 %v1328
    %1375 = vmatprep.subr.mxu0 0.0
    %1376 = vmatpush2.msra.mxu0 0.0
    %1377 = vmatprep.subr.mxu0 0.0
    %1378 = vmatpush2.msra.mxu0 0.0
    %1379 = vmatprep.subr.mxu0 0.0
    %1380 = vmatpush2.msra.mxu0 0.0
    %1381 = vmatprep.subr.mxu0 0.0
    %1382 = vmatpush2.msra.mxu0 0.0
    %1383 = vmatprep.subr.mxu0 0.0
    %1384 = vmatpush2.msra.mxu0 0.0
    %1385 = vmatprep.subr.mxu0 0.0
    %1386 = vmatpush2.msra.mxu0 0.0
    %1387 = vmatprep.subr.mxu0 0.0
    %1388 = vmatpush2.msra.mxu0 0.0
    %1389 = vmatprep.subr.mxu0 0.0
    %1390 = vmatpush2.msra.mxu0 0.0
    %1391 = vmatprep.subr.mxu0 0.0
    %1392 = vmatpush2.msra.mxu0 0.0
    %1393 = vmatprep.subr.mxu0 0.0
    %1394 = vmatpush2.msra.mxu0 0.0
    %1395 = vmatprep.subr.mxu0 0.0
    %1396 = vmatpush2.msra.mxu0 0.0
    %1397 = vmatprep.subr.mxu0 0.0
    %1398 = vmatpush2.msra.mxu0 0.0
    %1399 = vmatprep.subr.mxu0 0.0
    %1400 = vmatpush2.msra.mxu0 0.0
    %1401 = vmatprep.subr.mxu0 0.0
    %1402 = vmatpush2.msra.mxu0 0.0
    %1403 = vmatprep.subr.mxu0 0.0
    %1404 = vmatpush2.msra.mxu0 0.0
    %1405 = vmatprep.subr.mxu0 0.0
    %1406 = vmatpush2.msra.mxu0 0.0
    %1407 = vmatprep.mubr.f32.mxu0 0.0
    %1408 = vmatmul.mubr.f32.gmra.mxu0 %v1338
    %v1409 = vpop.f32.mrf.mxu0
    %v1410 = vadd.f32 %v1336, %v1409
    %v1411 = vpop.f32.mrf.mxu0
    %1412 = vmatprep.mubr.f32.mxu0 0.0
    %1413 = vmatmul.mubr.f32.gmra.mxu0 %v1341
    %v1414 = vpop.f32.mrf.mxu0
    %v1415 = vadd.f32 %v1336, %v1414
    %v1416 = vpop.f32.mrf.mxu0
    %1417 = vdwg.mxu0
    %v1418 = vmul.f32 %v1410, 0.5
    %v1419 = vmul.f32 %v1415, 0.5
    %v1420 = vmul.f32 %v1410, 0.044715
    %v1421 = vmul.f32 %v1415, 0.044715
    %v1422 = vmul.f32 %v1420, %v1410
    %v1423 = vmul.f32 %v1421, %v1415
    %v1424 = vmul.f32 %v1422, %v1410
    %v1425 = vmul.f32 %v1423, %v1415
    %v1426 = vadd.f32 %v1410, %v1424
    %v1427 = vadd.f32 %v1415, %v1425
    %v1428 = vmul.f32 %v1426, 0.7978846
    %v1429 = vmul.f32 %v1427, 0.7978846
    %v1430 = vtanh.pop %v1428
    %v1431 = vtanh.pop %v1429
    %v1432 = vadd.f32 %v1430, 1.0
    %v1433 = vadd.f32 %v1431, 1.0
    %v1434 = vmul.f32 %v1418, %v1432
    %v1435 = vmul.f32 %v1419, %v1433
    %v1436 = vld [vmem:[#allocation4 + $0x80] sm:$0xff]
    %v1437 = vld [vmem:[#allocation4 + $0x88] sm:$0xff]
    %v1438 = vld [vmem:[#allocation4 + $0x90] sm:$0xff]
    %v1439 = vld [vmem:[#allocation4 + $0x98] sm:$0xff]
    %v1440 = vld [vmem:[#allocation4 + $0xa0] sm:$0xff]
    %v1441 = vld [vmem:[#allocation4 + $0xa8] sm:$0xff]
    %v1442 = vld [vmem:[#allocation4 + $0xb0] sm:$0xff]
    %v1443 = vld [vmem:[#allocation4 + $0xb8] sm:$0xff]
    %v1444 = vld [vmem:[#allocation4 + $0xc0] sm:$0xff]
    %v1445 = vld [vmem:[#allocation4 + $0xc8] sm:$0xff]
    %v1446 = vld [vmem:[#allocation4 + $0xd0] sm:$0xff]
    %v1447 = vld [vmem:[#allocation4 + $0xd8] sm:$0xff]
    %v1448 = vld [vmem:[#allocation4 + $0xe0] sm:$0xff]
    %v1449 = vld [vmem:[#allocation4 + $0xe8] sm:$0xff]
    %v1450 = vld [vmem:[#allocation4 + $0xf0] sm:$0xff]
    %v1451 = vld [vmem:[#allocation4 + $0xf8] sm:$0xff]
    %v1452 = vld [vmem:[#allocation4 + $0x19] sm:$0x1]
    %v1453 = vlaneseq
    %v1454 = vshrl.u32 %v1453, 7
    %v1455 = vsub.s32 0, %v1454
    %v1456 = vrot.slane %v1452, %v1455
    %1457 = vmatprep.subr.mxu0 0.0
    %1458 = vmatpush1.msra.mxu0 %v1451
    %1459 = vmatprep.subr.mxu0 0.0
    %1460 = vmatpush1.msra.mxu0 %v1450
    %1461 = vmatprep.subr.mxu0 0.0
    %1462 = vmatpush1.msra.mxu0 %v1449
    %1463 = vmatprep.subr.mxu0 0.0
    %1464 = vmatpush1.msra.mxu0 %v1448
    %1465 = vmatprep.subr.mxu0 0.0
    %1466 = vmatpush1.msra.mxu0 %v1447
    %1467 = vmatprep.subr.mxu0 0.0
    %1468 = vmatpush1.msra.mxu0 %v1446
    %1469 = vmatprep.subr.mxu0 0.0
    %1470 = vmatpush1.msra.mxu0 %v1445
    %1471 = vmatprep.subr.mxu0 0.0
    %1472 = vmatpush1.msra.mxu0 %v1444
    %1473 = vmatprep.subr.mxu0 0.0
    %1474 = vmatpush1.msra.mxu0 %v1443
    %1475 = vmatprep.subr.mxu0 0.0
    %1476 = vmatpush1.msra.mxu0 %v1442
    %1477 = vmatprep.subr.mxu0 0.0
    %1478 = vmatpush1.msra.mxu0 %v1441
    %1479 = vmatprep.subr.mxu0 0.0
    %1480 = vmatpush1.msra.mxu0 %v1440
    %1481 = vmatprep.subr.mxu0 0.0
    %1482 = vmatpush1.msra.mxu0 %v1439
    %1483 = vmatprep.subr.mxu0 0.0
    %1484 = vmatpush1.msra.mxu0 %v1438
    %1485 = vmatprep.subr.mxu0 0.0
    %1486 = vmatpush1.msra.mxu0 %v1437
    %1487 = vmatprep.subr.mxu0 0.0
    %1488 = vmatpush1.msra.mxu0 %v1436
    %1489 = vmatprep.subr.mxu0 0.0
    %1490 = vmatpush2.msra.mxu0 0.0
    %1491 = vmatprep.subr.mxu0 0.0
    %1492 = vmatpush2.msra.mxu0 0.0
    %1493 = vmatprep.subr.mxu0 0.0
    %1494 = vmatpush2.msra.mxu0 0.0
    %1495 = vmatprep.subr.mxu0 0.0
    %1496 = vmatpush2.msra.mxu0 0.0
    %1497 = vmatprep.subr.mxu0 0.0
    %1498 = vmatpush2.msra.mxu0 0.0
    %1499 = vmatprep.subr.mxu0 0.0
    %1500 = vmatpush2.msra.mxu0 0.0
    %1501 = vmatprep.subr.mxu0 0.0
    %1502 = vmatpush2.msra.mxu0 0.0
    %1503 = vmatprep.subr.mxu0 0.0
    %1504 = vmatpush2.msra.mxu0 0.0
    %1505 = vmatprep.subr.mxu0 0.0
    %1506 = vmatpush2.msra.mxu0 0.0
    %1507 = vmatprep.subr.mxu0 0.0
    %1508 = vmatpush2.msra.mxu0 0.0
    %1509 = vmatprep.subr.mxu0 0.0
    %1510 = vmatpush2.msra.mxu0 0.0
    %1511 = vmatprep.subr.mxu0 0.0
    %1512 = vmatpush2.msra.mxu0 0.0
    %1513 = vmatprep.subr.mxu0 0.0
    %1514 = vmatpush2.msra.mxu0 0.0
    %1515 = vmatprep.subr.mxu0 0.0
    %1516 = vmatpush2.msra.mxu0 0.0
    %1517 = vmatprep.subr.mxu0 0.0
    %1518 = vmatpush2.msra.mxu0 0.0
    %1519 = vmatprep.subr.mxu0 0.0
    %1520 = vmatpush2.msra.mxu0 0.0
    %1521 = vmatprep.mubr.f32.mxu0 0.0
    %1522 = vmatmul.mubr.f32.gmra.mxu0 %v1434
    %v1523 = vpop.f32.mrf.mxu0
    %v1524 = vadd.f32 %v1456, %v1523
    %v1525 = vpop.f32.mrf.mxu0
    %1526 = vmatprep.mubr.f32.mxu0 0.0
    %1527 = vmatmul.mubr.f32.gmra.mxu0 %v1435
    %v1528 = vpop.f32.mrf.mxu0
    %v1529 = vadd.f32 %v1456, %v1528
    %v1530 = vpop.f32.mrf.mxu0
    %1531 = vdwg.mxu0
    %v1532 = vadd.f32 %v1286, %v1524
    %v1533 = vadd.f32 %v1287, %v1529
    %v1534 = vld [vmem:[#allocation4 + $0x14] sm:$0x1]
    %v1535 = vld [vmem:[#allocation4 + $0x15] sm:$0x1]
    %v1536 = vsel %vm47, %v1532, 0.0
    %1537 = vadd.xlane.f32.xlu0 %v1536
    %v1538 = vpop.xlane.xlu0 %1537
    %v1539 = vsel %vm47, %v1533, 0.0
    %1540 = vadd.xlane.f32.xlu0 %v1539
    %v1541 = vpop.xlane.xlu0 %1540
    %v1542 = vmul.f32 %v1538, %v54
    %v1543 = vmul.f32 %v1541, %v54
    %v1544 = vsub.f32 %v1532, %v1542
    %v1545 = vsub.f32 %v1533, %v1543
    %v1546 = vmul.f32 %v1544, %v1544
    %v1547 = vmul.f32 %v1545, %v1545
    %v1548 = vsel %vm47, %v1546, 0.0
    %1549 = vadd.xlane.f32.xlu0 %v1548
    %v1550 = vpop.xlane.xlu0 %1549
    %v1551 = vsel %vm47, %v1547, 0.0
    %1552 = vadd.xlane.f32.xlu0 %v1551
    %v1553 = vpop.xlane.xlu0 %1552
    %v1554 = vmul.f32 %v1550, %v54
    %v1555 = vmul.f32 %v1553, %v54
    %v1556 = vadd.f32 %v1554, 1e-05
    %v1557 = vadd.f32 %v1555, 1e-05
    %v1558 = vrsqrt.pop %v1556
    %v1559 = vrsqrt.pop %v1557
    %v1560 = vmul.f32 %v1544, %v1558
    %v1561 = vmul.f32 %v1545, %v1559
    %v1562 = vlaneseq
    %v1563 = vshrl.u32 %v1562, 7
    %v1564 = vsub.s32 0, %v1563
    %v1565 = vrot.slane %v1534, %v1564
    %v1566 = vmul.f32 %v1560, %v1565
    %v1567 = vmul.f32 %v1561, %v1565
    %v1568 = vlaneseq
    %v1569 = vshrl.u32 %v1568, 7
    %v1570 = vsub.s32 0, %v1569
    %v1571 = vrot.slane %v1535, %v1570
    %v1572 = vadd.f32 %v1566, %v1571
    %v1573 = vadd.f32 %v1567, %v1571
    %1574 = vst.msk [vmem:[%s2] sm:$0xff] %vm47, %v1572
    %1575 = vst.msk [vmem:[%s2 + $0x8] sm:$0xff] %vm47, %v1573
    // Predicated region
    $region18: #{plan_model_forward.1} parent=1 // pred_check
      _
    $region19: #{plan_model_forward.1} parent=1 // pred_check_branch
      %1577 = sbr.rel (0) target = $region21
    $region20: #{plan_model_forward.1} parent=1 // pred_region
      _
    $region21: #{plan_model_forward.1} parent=1 // pred_fallthru
      _
    // Predicated region
    $region22: #{plan_model_forward.1} parent=1 // pred_check
      _
    $region23: #{plan_model_forward.1} parent=1 // pred_check_branch
      %1579 = sbr.rel (0) target = $region25
    $region24: #{plan_model_forward.1} parent=1 // pred_region
      _
    $region25: #{plan_model_forward.1} parent=1 // pred_fallthru
      _
    %1580 = vsyncpa [#allocation3], 1
    %1581 = vsyncpa [#allocation5], 1

</llo_original>
